<compile_context>
chip_gen: v7x
topology: tpu7x:2x2x1
jax: 0.10.0
libtpu: 0.0.40
codegen_flags: <defaults>
</compile_context>

<pallas_src>
import jax
import jax.numpy as jnp
from jax.experimental import pallas as pl
from jax.experimental.pallas import tpu as pltpu

# ---- config consistent with the module defaults (reduced channels) ----
S = 7                        # grid size (H == W == S)
B = 2                        # boxes per cell
NUM_CLASSES = 20
STRIDE = 64
C_IN = 128                   # backbone feature channels (1024 in the full model)
C_HID = 128                  # hidden channels of fc conv1 (1024 in the full model)
C_OUT = 5 * B + NUM_CLASSES  # 30
N_BATCH = 2
BN_EPS = 1e-5
LEAKY_SLOPE = 0.1
SS = S * S
P_BOX = 5 + NUM_CLASSES      # 25 real lanes per box
BOX_LANES = 64               # padded lanes per box -> one 128-lane slab for both boxes
OUT_LANES = B * BOX_LANES    # 128

# ---- tiling ----
ROW_TILE = 64                # rows per grid step (multiple of 16 for bf16 sublane packing)
K_TAPS_PER_STEP = 3          # 3x3 taps folded per K step (keeps w1 block small at 1024 ch)
K_TILE = K_TAPS_PER_STEP * C_IN
K_TOTAL = 9 * C_IN
K_STEPS = K_TOTAL // K_TILE  # 3


# ---------------------------------------------------------------------------
# Fused kernel: fc head (3x3 conv [K-tiled] + LeakyReLU + 1x1 conv + bias + BN(eval))
#               followed by YOLOLayer decode, on ROW_TILE rows per grid step.
# ---------------------------------------------------------------------------
def yolov1_head_decode_kernel(x_ref, w1_ref, w2_ref, shift_ref, sxy_ref, o_ref, acc_ref):
    # x_ref:     (ROW_TILE, K_TILE)   bf16  im2col rows (tap-major columns), K-slice k
    # w1_ref:    (K_TILE, C_HID)      bf16  3x3 conv weights (tap-major rows), K-slice k
    # w2_ref:    (C_HID, C_OUT)       bf16  1x1 conv weights with BN scale folded in
    # shift_ref: (1, C_OUT)           f32   folded conv2-bias + BN shift
    # sxy_ref:   (ROW_TILE, 2)        f32   per-row (x_shift, y_shift) * stride (static)
    # o_ref:     (ROW_TILE, 128)      f32   decoded preds, box b in lanes [64*b, 64*b+25)
    # acc_ref:   (ROW_TILE, C_HID)    f32   accumulator for the K-tiled first matmul
    k = pl.program_id(1)

    @pl.when(k == 0)
    def _():
        acc_ref[...] = jnp.zeros_like(acc_ref)

    # partial 3x3-conv contribution of this K slice (MXU, f32 accumulation)
    acc_ref[...] += jnp.dot(x_ref[...], w1_ref[...], preferred_element_type=jnp.float32)

    @pl.when(k == pl.num_programs(1) - 1)
    def _():
        acc = acc_ref[...]
        h = jnp.maximum(acc, LEAKY_SLOPE * acc)                  # LeakyReLU(0.1) in f32
        z = jnp.dot(h.astype(jnp.bfloat16), w2_ref[...],
                    preferred_element_type=jnp.float32)
        z = z + shift_ref[...]                                   # conv2 bias + BN (eval)

        # --- YOLOLayer decode (exact divides for parity with torch) ---
        sig = 1.0 / (1.0 + jnp.exp(-z[:, :5 * B]))               # boxes + confidences (R,10)
        logits = z[:, 5 * B:]                                    # classes (R,20)
        m = jnp.max(logits, axis=1, keepdims=True)
        e = jnp.exp(logits - m)
        probs = e / jnp.sum(e, axis=1, keepdims=True)

        sxy = sxy_ref[...]                                       # (R,2) = (x,y) shift*stride
        rows = z.shape[0]
        pad = jnp.zeros((rows, BOX_LANES - P_BOX), jnp.float32)

        pieces = []
        for b in range(B):                                       # B == 2, unrolled
            xywh = sig[:, 4 * b:4 * b + 4]                       # (R,4) = (x,y,w,h)
            cxy = xywh[:, 0:2] * float(STRIDE) + sxy             # center * stride + shift
            wh = xywh[:, 2:4] * float(S * STRIDE)                # (w*W, h*H) * stride
            conf = sig[:, 4 * B + b:4 * B + b + 1]               # (R,1)
            pieces += [cxy - 0.5 * wh, cxy + 0.5 * wh, conf, probs, pad]   # 64 lanes

        o_ref[...] = jnp.concatenate(pieces, axis=1)             # single 128-lane store


# ---------------------------------------------------------------------------
# Wrapper: layout transpose, im2col, BN folding, static shift table, pallas_call.
# ---------------------------------------------------------------------------
def yolov1_forward(x_nchw, params):
    w1, w2, bias2, gamma, beta, r_mean, r_var = params
    N = x_nchw.shape[0]
    R = N * SS
    R_pad = pl.cdiv(R, ROW_TILE) * ROW_TILE          # 98 -> 128 (bf16 sublane / MXU friendly)

    # NCHW -> NHWC, pad=1, im2col 3x3 taps (tap-major columns matching w1 rows).
    x = jnp.transpose(x_nchw, (0, 2, 3, 1))                           # (N, S, S, C_IN)
    xp = jnp.pad(x, ((0, 0), (1, 1), (1, 1), (0, 0)))
    taps = [xp[:, dy:dy + S, dx:dx + S, :] for dy in range(3) for dx in range(3)]
    x_cols = jnp.stack(taps, axis=3).reshape(R, K_TOTAL)
    x_cols = jnp.pad(x_cols, ((0, R_pad - R), (0, 0))).astype(jnp.bfloat16)

    # Fold eval-mode BatchNorm scale into w2; keep shift (conv2 bias + BN) separate.
    bn_scale = gamma / jnp.sqrt(r_var + BN_EPS)
    w1_2d = w1.reshape(K_TOTAL, C_HID).astype(jnp.bfloat16)
    w2_2d = (w2 * bn_scale[None, :]).astype(jnp.bfloat16)
    shift2d = (beta + (bias2 - r_mean) * bn_scale).reshape(1, C_OUT).astype(jnp.float32)

    # Static per-row grid-shift table, pre-multiplied by stride.
    ridx = jnp.arange(R_pad)
    sidx = ridx % SS
    xs = (sidx % S).astype(jnp.float32) * float(STRIDE)
    ys = (sidx // S).astype(jnp.float32) * float(STRIDE)
    sxy = jnp.stack([xs, ys], axis=1)                                 # (R_pad, 2)

    cost = pl.CostEstimate(
        flops=2 * R_pad * K_TOTAL * C_HID + 2 * R_pad * C_HID * C_OUT,
        transcendentals=R_pad * (5 * B + NUM_CLASSES),
        bytes_accessed=(x_cols.size * 2 + w1_2d.size * 2 + w2_2d.size * 2
                        + shift2d.size * 4 + sxy.size * 4 + R_pad * OUT_LANES * 4),
    )

    out = pl.pallas_call(
        yolov1_head_decode_kernel,
        out_shape=jax.ShapeDtypeStruct((R_pad, OUT_LANES), jnp.float32),
        grid=(R_pad // ROW_TILE, K_STEPS),
        in_specs=[
            pl.BlockSpec((ROW_TILE, K_TILE), lambda i, k: (i, k)),
            pl.BlockSpec((K_TILE, C_HID), lambda i, k: (k, 0)),
            pl.BlockSpec((C_HID, C_OUT), lambda i, k: (0, 0)),
            pl.BlockSpec((1, C_OUT), lambda i, k: (0, 0)),
            pl.BlockSpec((ROW_TILE, 2), lambda i, k: (i, 0)),
        ],
        out_specs=pl.BlockSpec((ROW_TILE, OUT_LANES), lambda i, k: (i, 0)),
        scratch_shapes=[pltpu.VMEM((ROW_TILE, C_HID), jnp.float32)],
        compiler_params=pltpu.CompilerParams(
            dimension_semantics=("parallel", "arbitrary")),
        cost_estimate=cost,
    )(x_cols, w1_2d, w2_2d, shift2d, sxy)

    # (R_pad, 128) -> real rows -> (N, SS, B, 64) -> slice real lanes -> (N, SS*B, 25).
    # Row-major throughout, matching torch's (N, H, W, B, 25).reshape(N, -1, 25).
    preds = out[:R].reshape(N, SS, B, BOX_LANES)[..., :P_BOX]
    return preds.reshape(N, SS * B, P_BOX)


def init_params(key):
    k1, k2, k3 = jax.random.split(key, 3)
    # conv1 (3x3): kaiming_normal, mode='fan_out', relu gain => std = sqrt(2 / (C_HID*3*3))
    std1 = (2.0 / (C_HID * 3 * 3)) ** 0.5
    w1 = jax.random.normal(k1, (9, C_IN, C_HID), jnp.float32) * std1
    # conv2 (1x1): std = sqrt(2 / (C_OUT*1*1)); bias initialized to 0
    std2 = (2.0 / (C_OUT * 1 * 1)) ** 0.5
    w2 = jax.random.normal(k2, (C_HID, C_OUT), jnp.float32) * std2
    bias2 = jnp.zeros((C_OUT,), jnp.float32)
    # BatchNorm2d: weight ~ N(0, 0.01), bias = 0, running stats at defaults
    gamma = jax.random.normal(k3, (C_OUT,), jnp.float32) * 0.01
    beta = jnp.zeros((C_OUT,), jnp.float32)
    r_mean = jnp.zeros((C_OUT,), jnp.float32)
    r_var = jnp.ones((C_OUT,), jnp.float32)
    return (w1, w2, bias2, gamma, beta, r_mean, r_var)


if __name__ == "__main__":
    key = jax.random.PRNGKey(0)
    k_param, k_x = jax.random.split(key)
    params = init_params(k_param)
    # input: backbone feature map, NCHW like PyTorch (reduced channel count)
    x = jax.random.normal(k_x, (N_BATCH, C_IN, S, S), jnp.float32)

    preds = jax.jit(yolov1_forward)(x, params)
    preds = jax.block_until_ready(preds)

    assert preds.shape == (N_BATCH, S * S * B, 5 + NUM_CLASSES), preds.shape
    assert bool(jnp.all(jnp.isfinite(preds)))
    print("KERNEL_OK")
</pallas_src>

<mosaic_0001>
module attributes {stable_mosaic.version = 11 : i64} {
  func.func @yolov1_head_decode_kernel(%arg0: i32, %arg1: i32, %arg2: memref<64x384xbf16, #tpu.memory_space<vmem>>, %arg3: memref<384x128xbf16, #tpu.memory_space<vmem>>, %arg4: memref<128x30xbf16, #tpu.memory_space<vmem>>, %arg5: memref<1x30xf32, #tpu.memory_space<vmem>>, %arg6: memref<64x2xf32, #tpu.memory_space<vmem>>, %arg7: memref<64x128xf32, #tpu.memory_space<vmem>>, %arg8: memref<64x128xf32, #tpu.memory_space<vmem>>) attributes {dimension_semantics = [#tpu.dimension_semantics<parallel>, #tpu.dimension_semantics<arbitrary>], iteration_bounds = array<i64: 2, 3>, scalar_prefetch = 0 : i64, scratch_operands = 1 : i64, tpu.core_type = #tpu.core_type<tc>, window_params = [{transform_indices = @transform_0, window_bounds = array<i64: 64, 384>}, {transform_indices = @transform_1, window_bounds = array<i64: 384, 128>}, {pipeline_mode = #tpu.pipeline_mode<synchronous>, transform_indices = @transform_2, window_bounds = array<i64: 128, 30>}, {pipeline_mode = #tpu.pipeline_mode<synchronous>, transform_indices = @transform_3, window_bounds = array<i64: 1, 30>}, {transform_indices = @transform_4, window_bounds = array<i64: 64, 2>}, {transform_indices = @transform_5, window_bounds = array<i64: 64, 128>}]} {
    %c0_i32 = arith.constant 0 : i32
    %0 = arith.cmpi eq, %arg1, %c0_i32 : i32
    %1 = arith.extui %0 : i1 to i32
    %c0_i32_0 = arith.constant 0 : i32
    %2 = arith.cmpi ne, %1, %c0_i32_0 : i32
    scf.if %2 {
      %cst_9 = arith.constant 0.000000e+00 : f32
      %12 = vector.broadcast %cst_9 : f32 to vector<64x128xf32>
      %c0_10 = arith.constant 0 : index
      %c0_11 = arith.constant 0 : index
      %13 = vector.load %arg8[%c0_10, %c0_11] : memref<64x128xf32, #tpu.memory_space<vmem>>, vector<64x128xf32>
      tpu.vector_store %arg8[%c0_10, %c0_11], %12 {strides = array<i32>} : memref<64x128xf32, #tpu.memory_space<vmem>>, vector<64x128xf32>,
    } else {
    }
    %c0 = arith.constant 0 : index
    %c0_1 = arith.constant 0 : index
    %3 = vector.load %arg8[%c0, %c0_1] : memref<64x128xf32, #tpu.memory_space<vmem>>, vector<64x128xf32>
    %c0_2 = arith.constant 0 : index
    %c0_3 = arith.constant 0 : index
    %4 = vector.load %arg2[%c0_2, %c0_3] : memref<64x384xbf16, #tpu.memory_space<vmem>>, vector<64x384xbf16>
    %c0_4 = arith.constant 0 : index
    %c0_5 = arith.constant 0 : index
    %5 = vector.load %arg3[%c0_4, %c0_5] : memref<384x128xbf16, #tpu.memory_space<vmem>>, vector<384x128xbf16>
    %cst = arith.constant dense<0.000000e+00> : vector<64x128xf32>
    %6 = tpu.matmul %4, %5, %cst {dimension_numbers = #tpu.dot_dimension_numbers<[1], [0], [0], [1], [0, 0, 1, 1], [], []>} : vector<64x384xbf16>, vector<384x128xbf16>, vector<64x128xf32> -> vector<64x128xf32>
    %7 = arith.addf %3, %6 : vector<64x128xf32>
    %c0_6 = arith.constant 0 : index
    %c0_7 = arith.constant 0 : index
    %8 = vector.load %arg8[%c0_6, %c0_7] : memref<64x128xf32, #tpu.memory_space<vmem>>, vector<64x128xf32>
    tpu.vector_store %arg8[%c0_6, %c0_7], %7 {strides = array<i32>} : memref<64x128xf32, #tpu.memory_space<vmem>>, vector<64x128xf32>,
    %c2_i32 = arith.constant 2 : i32
    %9 = arith.cmpi eq, %arg1, %c2_i32 : i32
    %10 = arith.extui %9 : i1 to i32
    %c0_i32_8 = arith.constant 0 : i32
    %11 = arith.cmpi ne, %10, %c0_i32_8 : i32
    scf.if %11 {
      %c0_9 = arith.constant 0 : index
      %c0_10 = arith.constant 0 : index
      %12 = vector.load %arg8[%c0_9, %c0_10] : memref<64x128xf32, #tpu.memory_space<vmem>>, vector<64x128xf32>
      %cst_11 = arith.constant 1.000000e-01 : f32
      %13 = vector.broadcast %cst_11 : f32 to vector<64x128xf32>
      %14 = arith.mulf %13, %12 : vector<64x128xf32>
      %15 = arith.maximumf %12, %14 : vector<64x128xf32>
      %16 = arith.truncf %15 : vector<64x128xf32> to vector<64x128xbf16>
      %c0_12 = arith.constant 0 : index
      %c0_13 = arith.constant 0 : index
      %17 = vector.load %arg4[%c0_12, %c0_13] : memref<128x30xbf16, #tpu.memory_space<vmem>>, vector<128x30xbf16>
      %cst_14 = arith.constant dense<0.000000e+00> : vector<64x30xf32>
      %18 = tpu.matmul %16, %17, %cst_14 {dimension_numbers = #tpu.dot_dimension_numbers<[1], [0], [0], [1], [0, 0, 1, 1], [], []>} : vector<64x128xbf16>, vector<128x30xbf16>, vector<64x30xf32> -> vector<64x30xf32>
      %c0_15 = arith.constant 0 : index
      %c0_16 = arith.constant 0 : index
      %19 = vector.load %arg5[%c0_15, %c0_16] : memref<1x30xf32, #tpu.memory_space<vmem>>, vector<1x30xf32>
      %20 = vector.broadcast %19 : vector<1x30xf32> to vector<64x30xf32>
      %21 = arith.addf %18, %20 : vector<64x30xf32>
      %22 = vector.extract_strided_slice %21 {offsets = [0, 0], sizes = [64, 10], strides = [1, 1]} : vector<64x30xf32> to vector<64x10xf32>
      %cst_17 = arith.constant 0.000000e+00 : f32
      %23 = vector.broadcast %cst_17 : f32 to vector<64x10xf32>
      %24 = arith.subf %23, %22 : vector<64x10xf32>
      %25 = math.exp %24 : vector<64x10xf32>
      %cst_18 = arith.constant 1.000000e+00 : f32
      %26 = vector.broadcast %cst_18 : f32 to vector<64x10xf32>
      %27 = arith.addf %26, %25 : vector<64x10xf32>
      %cst_19 = arith.constant 1.000000e+00 : f32
      %28 = vector.broadcast %cst_19 : f32 to vector<64x10xf32>
      %29 = arith.divf %28, %27 : vector<64x10xf32>
      %30 = vector.extract_strided_slice %21 {offsets = [0, 10], sizes = [64, 20], strides = [1, 1]} : vector<64x30xf32> to vector<64x20xf32>
      %cst_20 = arith.constant dense<0xFF800000> : vector<64xf32>
      %31 = vector.multi_reduction <maximumf>, %30, %cst_20 [1] : vector<64x20xf32> to vector<64xf32>
      %32 = vector.shape_cast %31 : vector<64xf32> to vector<64x1xf32>
      %33 = vector.broadcast %32 : vector<64x1xf32> to vector<64x20xf32>
      %34 = arith.subf %30, %33 : vector<64x20xf32>
      %35 = math.exp %34 : vector<64x20xf32>
      %cst_21 = arith.constant dense<0.000000e+00> : vector<64xf32>
      %36 = vector.multi_reduction <add>, %35, %cst_21 [1] : vector<64x20xf32> to vector<64xf32>
      %37 = vector.shape_cast %36 : vector<64xf32> to vector<64x1xf32>
      %38 = vector.broadcast %37 : vector<64x1xf32> to vector<64x20xf32>
      %39 = arith.divf %35, %38 : vector<64x20xf32>
      %c0_22 = arith.constant 0 : index
      %c0_23 = arith.constant 0 : index
      %40 = vector.load %arg6[%c0_22, %c0_23] : memref<64x2xf32, #tpu.memory_space<vmem>>, vector<64x2xf32>
      %cst_24 = arith.constant 0.000000e+00 : f32
      %41 = vector.broadcast %cst_24 : f32 to vector<64x39xf32>
      %42 = vector.extract_strided_slice %29 {offsets = [0, 0], sizes = [64, 4], strides = [1, 1]} : vector<64x10xf32> to vector<64x4xf32>
      %43 = vector.extract_strided_slice %42 {offsets = [0, 0], sizes = [64, 2], strides = [1, 1]} : vector<64x4xf32> to vector<64x2xf32>
      %cst_25 = arith.constant 6.400000e+01 : f32
      %44 = vector.broadcast %cst_25 : f32 to vector<64x2xf32>
      %45 = arith.mulf %43, %44 : vector<64x2xf32>
      %46 = arith.addf %45, %40 : vector<64x2xf32>
      %47 = vector.extract_strided_slice %42 {offsets = [0, 2], sizes = [64, 2], strides = [1, 1]} : vector<64x4xf32> to vector<64x2xf32>
      %cst_26 = arith.constant 4.480000e+02 : f32
      %48 = vector.broadcast %cst_26 : f32 to vector<64x2xf32>
      %49 = arith.mulf %47, %48 : vector<64x2xf32>
      %50 = vector.extract_strided_slice %29 {offsets = [0, 8], sizes = [64, 1], strides = [1, 1]} : vector<64x10xf32> to vector<64x1xf32>
      %cst_27 = arith.constant 5.000000e-01 : f32
      %51 = vector.broadcast %cst_27 : f32 to vector<64x2xf32>
      %52 = arith.mulf %51, %49 : vector<64x2xf32>
      %53 = arith.subf %46, %52 : vector<64x2xf32>
      %cst_28 = arith.constant 5.000000e-01 : f32
      %54 = vector.broadcast %cst_28 : f32 to vector<64x2xf32>
      %55 = arith.mulf %54, %49 : vector<64x2xf32>
      %56 = arith.addf %46, %55 : vector<64x2xf32>
      %57 = vector.extract_strided_slice %29 {offsets = [0, 4], sizes = [64, 4], strides = [1, 1]} : vector<64x10xf32> to vector<64x4xf32>
      %58 = vector.extract_strided_slice %57 {offsets = [0, 0], sizes = [64, 2], strides = [1, 1]} : vector<64x4xf32> to vector<64x2xf32>
      %cst_29 = arith.constant 6.400000e+01 : f32
      %59 = vector.broadcast %cst_29 : f32 to vector<64x2xf32>
      %60 = arith.mulf %58, %59 : vector<64x2xf32>
      %61 = arith.addf %60, %40 : vector<64x2xf32>
      %62 = vector.extract_strided_slice %57 {offsets = [0, 2], sizes = [64, 2], strides = [1, 1]} : vector<64x4xf32> to vector<64x2xf32>
      %cst_30 = arith.constant 4.480000e+02 : f32
      %63 = vector.broadcast %cst_30 : f32 to vector<64x2xf32>
      %64 = arith.mulf %62, %63 : vector<64x2xf32>
      %65 = vector.extract_strided_slice %29 {offsets = [0, 9], sizes = [64, 1], strides = [1, 1]} : vector<64x10xf32> to vector<64x1xf32>
      %cst_31 = arith.constant 5.000000e-01 : f32
      %66 = vector.broadcast %cst_31 : f32 to vector<64x2xf32>
      %67 = arith.mulf %66, %64 : vector<64x2xf32>
      %68 = arith.subf %61, %67 : vector<64x2xf32>
      %cst_32 = arith.constant 5.000000e-01 : f32
      %69 = vector.broadcast %cst_32 : f32 to vector<64x2xf32>
      %70 = arith.mulf %69, %64 : vector<64x2xf32>
      %71 = arith.addf %61, %70 : vector<64x2xf32>
      %72 = tpu.concatenate %53, %56, %50, %39, %41, %68, %71, %65, %39, %41 in 1 : vector<64x2xf32>, vector<64x2xf32>, vector<64x1xf32>, vector<64x20xf32>, vector<64x39xf32>, vector<64x2xf32>, vector<64x2xf32>, vector<64x1xf32>, vector<64x20xf32>, vector<64x39xf32> -> vector<64x128xf32>
      %c0_33 = arith.constant 0 : index
      %c0_34 = arith.constant 0 : index
      %73 = vector.load %arg7[%c0_33, %c0_34] : memref<64x128xf32, #tpu.memory_space<vmem>>, vector<64x128xf32>
      tpu.vector_store %arg7[%c0_33, %c0_34], %72 {strides = array<i32>} : memref<64x128xf32, #tpu.memory_space<vmem>>, vector<64x128xf32>,
    } else {
    }
    return
  }
  func.func @transform_0(%arg0: i32, %arg1: i32) -> (i32, i32) {
    %c0_i32 = arith.constant 0 : i32
    return %arg0, %arg1 : i32, i32
  }
  func.func @transform_1(%arg0: i32, %arg1: i32) -> (i32, i32) {
    %c0_i32 = arith.constant 0 : i32
    %c0_i32_0 = arith.constant 0 : i32
    return %arg1, %c0_i32 : i32, i32
  }
  func.func @transform_2(%arg0: i32, %arg1: i32) -> (i32, i32) {
    %c0_i32 = arith.constant 0 : i32
    %c0_i32_0 = arith.constant 0 : i32
    %c0_i32_1 = arith.constant 0 : i32
    return %c0_i32, %c0_i32_0 : i32, i32
  }
  func.func @transform_3(%arg0: i32, %arg1: i32) -> (i32, i32) {
    %c0_i32 = arith.constant 0 : i32
    %c0_i32_0 = arith.constant 0 : i32
    %c0_i32_1 = arith.constant 0 : i32
    return %c0_i32, %c0_i32_0 : i32, i32
  }
  func.func @transform_4(%arg0: i32, %arg1: i32) -> (i32, i32) {
    %c0_i32 = arith.constant 0 : i32
    %c0_i32_0 = arith.constant 0 : i32
    return %arg0, %c0_i32 : i32, i32
  }
  func.func @transform_5(%arg0: i32, %arg1: i32) -> (i32, i32) {
    %c0_i32 = arith.constant 0 : i32
    %c0_i32_0 = arith.constant 0 : i32
    return %arg0, %c0_i32 : i32, i32
  }
}

</mosaic_0001>

<llo_original>
// kernel: yolov1_forward.1
$region0: #{yolov1_forward.1}
  #allocation0 [shape = 'u32[]', space=smem, size = 0x4, offset = 0x4, fixed_abs, tag = 'smem constant byte address 0x4 - core index']
  #allocation1 [shape = 'u32[144,128]{1,0:T(1,128)}', space=vmem, size = 0x12000, scoped, tag = 'internal scratch']
  #allocation2 [shape = 'f32[64,128]{1,0:T(8,128)}', space=vmem, size = 0x8000, scoped, tag = 'scratch operand']
  %s0 = inlined_call_operand.vmem [shape: bf16[128,1152], index: 0, kind: input, shape index: {}]
  %s1 = inlined_call_operand.vmem [shape: bf16[1152,128], index: 1, kind: input, shape index: {}]
  %s2 = inlined_call_operand.vmem [shape: bf16[128,30], index: 2, kind: input, shape index: {}]
  %s3 = inlined_call_operand.vmem [shape: f32[1,30], index: 3, kind: input, shape index: {}]
  %s4 = inlined_call_operand.vmem [shape: f32[128,2], index: 4, kind: input, shape index: {}]
  %s5 = inlined_call_operand.vmem [shape: f32[128,128], index: 5, kind: output, shape index: {}]
  %s6 = sld [smem:[#allocation0]]
  $region87: #{yolov1_forward.1} parent=0
    _
  %s8 = ssub.s32 1, %s6
  %s9 = scalar_select 0, %s8, %s6
  $region1: #{yolov1_forward.1} parent=0
    #allocation3 [shape = 'u8[98304]{0}', space=vmem, size = 0x18000, scoped, tag = 'input window, operand 0']
    loop: start=0, step=1, limit=8
    $region2: #{yolov1_forward.1} parent=1 // loop_pre_header
      _
    $region3: #{yolov1_forward.1} parent=1 // loop_header
      %s11 = sphi 0, %s15
      %p12 = scmp.ge.s32.totalorder %s11, 8
      %s18 = sphi 0, %s30
      %s19 = sphi 0, %s26
      %s20 = sphi 0, %s18
      %s21 = sphi 0, %s19
      %s22 = sphi 0, %s20
      %s23 = sphi 0, %s21
      %s35 = sphi 0, %s37
      %s38 = sphi 0, %s35
      %s39 = sphi 0, %s38
      %s55 = sphi 0, %s39
      %s61 = sphi 0, %s63
      %s64 = sphi 0, %s61
      %s65 = sphi 0, %s64
      %s81 = sphi 0, %s65
      %s85 = sphi 0, %s85
      %s87 = sphi 0, %s85
      %s88 = sphi 0, %s87
      %s102 = sphi 0, %s88
      %s106 = sphi 0, %s106
      %s108 = sphi 0, %s106
      %s109 = sphi 0, %s108
      %s123 = sphi 0, %s109
      %s129 = sphi 0, %s131
      %s132 = sphi 0, %s129
      %s133 = sphi 0, %s132
      %s149 = sphi 0, %s133
      %s155 = sphi 0, %s157
      %s158 = sphi 0, %s155
      %s159 = sphi 0, %s158
      %s175 = sphi 0, %s159
    $region4: #{yolov1_forward.1} parent=1 // loop_header_branch
      %14 = sbr.rel (%p12) target = $region8
    $region5: #{yolov1_forward.1} parent=1 // loop_body
      %s16 = ssub.s32 %s11, 1
      %s17 = ssub.s32 %s11, 2
      %s24 = sadd.s32 1, %s19
      %p25 = scmp.ge.s32.totalorder %s24, 3
      %s26 = scalar_select %p25, 0, %s24
      %s27 = sadd.s32 1, %s18
      %s28 = scalar_select %p25, %s27, %s18
      %p29 = scmp.ge.s32.totalorder %s28, 2
      %s30 = scalar_select %p29, 0, %s28
      %s31 = ssub.s32 %s18, %s30
      %s32 = ssub.s32 %s19, %s26
      %s33 = sor.u32 %s31, %s32
      %p34 = scmp.eq.s32.totalorder %s33, 0
      %s36 = sadd.s32 %s35, 1
      %s37 = scalar_select %p34, %s35, %s36
      %p40 = pneg %p34
      %p41 = scmp.eq.s32.totalorder %s11, 5
      %p42 = por %p40, %p41
      %p43 = scmp.ne.s32.totalorder %s35, %s38
      %p44 = scmp.eq.s32.totalorder %s11, 0
      %p45 = por %p43, %p44
      %p46 = scmp.ne.s32.totalorder %s35, %s38
      %p47 = scmp.eq.s32.totalorder %s16, 5
      %p48 = por %p46, %p47
      %p49 = scmp.ne.s32.totalorder %s38, %s39
      %p50 = scmp.eq.s32.totalorder %s16, 0
      %p51 = por %p49, %p50
      %p52 = scmp.ne.s32.totalorder %s38, %s39
      %p53 = scmp.eq.s32.totalorder %s17, 5
      %p54 = por %p52, %p53
      %p56 = scmp.ne.s32.totalorder %s39, %s55
      %p57 = scmp.eq.s32.totalorder %s17, 0
      %p58 = por %p56, %p57
      %s59 = ssub.s32 %s19, %s26
      %p60 = scmp.eq.s32.totalorder %s59, 0
      %s62 = sadd.s32 %s61, 1
      %s63 = scalar_select %p60, %s61, %s62
      %p66 = pneg %p60
      %p67 = scmp.eq.s32.totalorder %s11, 5
      %p68 = por %p66, %p67
      %p69 = scmp.ne.s32.totalorder %s61, %s64
      %p70 = scmp.eq.s32.totalorder %s11, 0
      %p71 = por %p69, %p70
      %p72 = scmp.ne.s32.totalorder %s61, %s64
      %p73 = scmp.eq.s32.totalorder %s16, 5
      %p74 = por %p72, %p73
      %p75 = scmp.ne.s32.totalorder %s64, %s65
      %p76 = scmp.eq.s32.totalorder %s16, 0
      %p77 = por %p75, %p76
      %p78 = scmp.ne.s32.totalorder %s64, %s65
      %p79 = scmp.eq.s32.totalorder %s17, 5
      %p80 = por %p78, %p79
      %p82 = scmp.ne.s32.totalorder %s65, %s81
      %p83 = scmp.eq.s32.totalorder %s17, 0
      %p84 = por %p82, %p83
      %s86 = sadd.s32 %s85, 1
      %p89 = scmp.eq.s32.totalorder %s11, 5
      %p90 = scmp.ne.s32.totalorder %s85, %s87
      %p91 = scmp.eq.s32.totalorder %s11, 0
      %p92 = por %p90, %p91
      %p93 = scmp.ne.s32.totalorder %s85, %s87
      %p94 = scmp.eq.s32.totalorder %s16, 5
      %p95 = por %p93, %p94
      %p96 = scmp.ne.s32.totalorder %s87, %s88
      %p97 = scmp.eq.s32.totalorder %s16, 0
      %p98 = por %p96, %p97
      %p99 = scmp.ne.s32.totalorder %s87, %s88
      %p100 = scmp.eq.s32.totalorder %s17, 5
      %p101 = por %p99, %p100
      %p103 = scmp.ne.s32.totalorder %s88, %s102
      %p104 = scmp.eq.s32.totalorder %s17, 0
      %p105 = por %p103, %p104
      %s107 = sadd.s32 %s106, 1
      %p110 = scmp.eq.s32.totalorder %s11, 5
      %p111 = scmp.ne.s32.totalorder %s106, %s108
      %p112 = scmp.eq.s32.totalorder %s11, 0
      %p113 = por %p111, %p112
      %p114 = scmp.ne.s32.totalorder %s106, %s108
      %p115 = scmp.eq.s32.totalorder %s16, 5
      %p116 = por %p114, %p115
      %p117 = scmp.ne.s32.totalorder %s108, %s109
      %p118 = scmp.eq.s32.totalorder %s16, 0
      %p119 = por %p117, %p118
      %p120 = scmp.ne.s32.totalorder %s108, %s109
      %p121 = scmp.eq.s32.totalorder %s17, 5
      %p122 = por %p120, %p121
      %p124 = scmp.ne.s32.totalorder %s109, %s123
      %p125 = scmp.eq.s32.totalorder %s17, 0
      %p126 = por %p124, %p125
      %s127 = ssub.s32 %s18, %s30
      %p128 = scmp.eq.s32.totalorder %s127, 0
      %s130 = sadd.s32 %s129, 1
      %s131 = scalar_select %p128, %s129, %s130
      %p134 = pneg %p128
      %p135 = scmp.eq.s32.totalorder %s11, 5
      %p136 = por %p134, %p135
      %p137 = scmp.ne.s32.totalorder %s129, %s132
      %p138 = scmp.eq.s32.totalorder %s11, 0
      %p139 = por %p137, %p138
      %p140 = scmp.ne.s32.totalorder %s129, %s132
      %p141 = scmp.eq.s32.totalorder %s16, 5
      %p142 = por %p140, %p141
      %p143 = scmp.ne.s32.totalorder %s132, %s133
      %p144 = scmp.eq.s32.totalorder %s16, 0
      %p145 = por %p143, %p144
      %p146 = scmp.ne.s32.totalorder %s132, %s133
      %p147 = scmp.eq.s32.totalorder %s17, 5
      %p148 = por %p146, %p147
      %p150 = scmp.ne.s32.totalorder %s133, %s149
      %p151 = scmp.eq.s32.totalorder %s17, 0
      %p152 = por %p150, %p151
      %s153 = ssub.s32 %s18, %s30
      %p154 = scmp.eq.s32.totalorder %s153, 0
      %s156 = sadd.s32 %s155, 1
      %s157 = scalar_select %p154, %s155, %s156
      %p160 = pneg %p154
      %p161 = scmp.eq.s32.totalorder %s11, 5
      %p162 = por %p160, %p161
      %p163 = scmp.ne.s32.totalorder %s155, %s158
      %p164 = scmp.eq.s32.totalorder %s11, 0
      %p165 = por %p163, %p164
      %p166 = scmp.ne.s32.totalorder %s155, %s158
      %p167 = scmp.eq.s32.totalorder %s16, 5
      %p168 = por %p166, %p167
      %p169 = scmp.ne.s32.totalorder %s158, %s159
      %p170 = scmp.eq.s32.totalorder %s16, 0
      %p171 = por %p169, %p170
      %p172 = scmp.ne.s32.totalorder %s158, %s159
      %p173 = scmp.eq.s32.totalorder %s17, 5
      %p174 = por %p172, %p173
      %p176 = scmp.ne.s32.totalorder %s159, %s175
      %p177 = scmp.eq.s32.totalorder %s17, 0
      %p178 = por %p176, %p177
      %p179 = scmp.le.s32.totalorder 1, %s11
      %p180 = scmp.lt.s32.totalorder %s11, 7
      %p181 = pnand %p179, %p180
      %p182 = pneg %p181
      // Predicated region
      $region9: #{yolov1_forward.1} parent=5 // pred_check
        _
      $region10: #{yolov1_forward.1} parent=5 // pred_check_branch
        %184 = sbr.rel (%p181) target = $region12
      $region11: #{yolov1_forward.1} parent=5 // pred_region
        %s185 = ssub.s32 %s11, 1
        // Predicated region
        $region13: #{yolov1_forward.1} parent=11 // pred_check
          %p186 = pneg %p98
        $region14: #{yolov1_forward.1} parent=11 // pred_check_branch
          %188 = sbr.rel (%p186) target = $region16
        $region15: #{yolov1_forward.1} parent=11 // pred_region
          _
        $region16: #{yolov1_forward.1} parent=11 // pred_fallthru
          _
        // Predicated region
        $region17: #{yolov1_forward.1} parent=11 // pred_check
          %p189 = pneg %p119
        $region18: #{yolov1_forward.1} parent=11 // pred_check_branch
          %191 = sbr.rel (%p189) target = $region20
        $region19: #{yolov1_forward.1} parent=11 // pred_region
          _
        $region20: #{yolov1_forward.1} parent=11 // pred_fallthru
          _
      $region12: #{yolov1_forward.1} parent=5 // pred_fallthru
        _
      %p192 = scmp.lt.s32.totalorder %s11, 6
      // Predicated region
      $region21: #{yolov1_forward.1} parent=5 // pred_check
        %p193 = pneg %p192
      $region22: #{yolov1_forward.1} parent=5 // pred_check_branch
        %195 = sbr.rel (%p193) target = $region24
      $region23: #{yolov1_forward.1} parent=5 // pred_region
        // Predicated region
        $region25: #{yolov1_forward.1} parent=23 // pred_check
          %p196 = pneg %p45
        $region26: #{yolov1_forward.1} parent=23 // pred_check_branch
          %198 = sbr.rel (%p196) target = $region28
        $region27: #{yolov1_forward.1} parent=23 // pred_region
          %s199 = sand.u32 %s35, 1
          %s200 = sand.u32 %s35, 1
          %s201 = smul.addr %s200, 96
          %s202 = scalar_lea.vmem [#allocation3], %s201
          %s203 = smul.u32 8, %s18
          %s204 = smul.u32 3, %s19
          %s205 = smul.addr %s203, 9
          %s206 = sadd.s32 %s204, %s205
          %s207 = smul.addr %s206, 4
          %s208 = scalar_lea.vmem %s0, %s207
          // Predicated region
          $region29: #{yolov1_forward.1} parent=27 // pred_check
            _
          $region30: #{yolov1_forward.1} parent=27 // pred_check_branch
            %210 = sbr.rel (0) target = $region32
          $region31: #{yolov1_forward.1} parent=27 // pred_region
            // Predicated region
            $region33: #{yolov1_forward.1} parent=31 // pred_check
              _
            $region34: #{yolov1_forward.1} parent=31 // pred_check_branch
              %212 = sbr.rel (0) target = $region36
            $region35: #{yolov1_forward.1} parent=31 // pred_region
              %s213 = scalar_lea.vmem %s208, 8
              %s214 = scalar_lea.vmem %s202, 8 [#allocation3]
              loop: start=0, step=1, limit=1
              $region37: #{yolov1_forward.1} parent=35 // loop_pre_header
                _
              $region38: #{yolov1_forward.1} parent=35 // loop_header
                %s216 = sphi 0, %s220
                %p217 = scmp.ge.s32.totalorder %s216, 1
                %s221 = sphi %s208, %s208
                %s222 = sphi %s202, %s202
              $region39: #{yolov1_forward.1} parent=35 // loop_header_branch
                %219 = sbr.rel (%p217) target = $region43
              $region40: #{yolov1_forward.1} parent=35 // loop_body
                %v223 = vld [vmem:[%s221] sm:$0xff]
                %224 = vst [vmem:[%s222] sm:$0xff] %v223
                %v225 = vld [vmem:[%s221 + $0x24] sm:$0xff]
                %226 = vst [vmem:[%s222 + $0xc] sm:$0xff] %v225
                %v227 = vld [vmem:[%s221 + $0x48] sm:$0xff]
                %228 = vst [vmem:[%s222 + $0x18] sm:$0xff] %v227
                %v229 = vld [vmem:[%s221 + $0x6c] sm:$0xff]
                %230 = vst [vmem:[%s222 + $0x24] sm:$0xff] %v229
                %v231 = vld [vmem:[%s221 + $0x90] sm:$0xff]
                %232 = vst [vmem:[%s222 + $0x30] sm:$0xff] %v231
                %v233 = vld [vmem:[%s221 + $0xb4] sm:$0xff]
                %234 = vst [vmem:[%s222 + $0x3c] sm:$0xff] %v233
                %v235 = vld [vmem:[%s221 + $0xd8] sm:$0xff]
                %236 = vst [vmem:[%s222 + $0x48] sm:$0xff] %v235
                %v237 = vld [vmem:[%s221 + $0xfc] sm:$0xff]
                %238 = vst [vmem:[%s222 + $0x54] sm:$0xff] %v237
              $region41: #{yolov1_forward.1} parent=35 // loop_footer
                %s220 = sadd.s32 1, %s216
              $region42: #{yolov1_forward.1} parent=35 // loop_footer_branch
                %215 = sbr.rel target = $region38
              $region43: #{yolov1_forward.1} parent=35 // loop_exit
                _
              loop: start=0, step=1, limit=1
              $region44: #{yolov1_forward.1} parent=35 // loop_pre_header
                _
              $region45: #{yolov1_forward.1} parent=35 // loop_header
                %s241 = sphi 0, %s245
                %p242 = scmp.ge.s32.totalorder %s241, 1
                %s246 = sphi %s213, %s213
                %s247 = sphi %s214, %s214
              $region46: #{yolov1_forward.1} parent=35 // loop_header_branch
                %244 = sbr.rel (%p242) target = $region50
              $region47: #{yolov1_forward.1} parent=35 // loop_body
                %v248 = vld [vmem:[%s246] sm:$0xf]
                %249 = vst [vmem:[%s247] sm:$0xf] %v248
                %v250 = vld [vmem:[%s246 + $0x24] sm:$0xf]
                %251 = vst [vmem:[%s247 + $0xc] sm:$0xf] %v250
                %v252 = vld [vmem:[%s246 + $0x48] sm:$0xf]
                %253 = vst [vmem:[%s247 + $0x18] sm:$0xf] %v252
                %v254 = vld [vmem:[%s246 + $0x6c] sm:$0xf]
                %255 = vst [vmem:[%s247 + $0x24] sm:$0xf] %v254
                %v256 = vld [vmem:[%s246 + $0x90] sm:$0xf]
                %257 = vst [vmem:[%s247 + $0x30] sm:$0xf] %v256
                %v258 = vld [vmem:[%s246 + $0xb4] sm:$0xf]
                %259 = vst [vmem:[%s247 + $0x3c] sm:$0xf] %v258
                %v260 = vld [vmem:[%s246 + $0xd8] sm:$0xf]
                %261 = vst [vmem:[%s247 + $0x48] sm:$0xf] %v260
                %v262 = vld [vmem:[%s246 + $0xfc] sm:$0xf]
                %263 = vst [vmem:[%s247 + $0x54] sm:$0xf] %v262
              $region48: #{yolov1_forward.1} parent=35 // loop_footer
                %s245 = sadd.s32 1, %s241
              $region49: #{yolov1_forward.1} parent=35 // loop_footer_branch
                %240 = sbr.rel target = $region45
              $region50: #{yolov1_forward.1} parent=35 // loop_exit
                _
            $region36: #{yolov1_forward.1} parent=31 // pred_fallthru
              _
          $region32: #{yolov1_forward.1} parent=27 // pred_fallthru
            _
          %264 = vnop
        $region28: #{yolov1_forward.1} parent=23 // pred_fallthru
          _
        // Predicated region
        $region51: #{yolov1_forward.1} parent=23 // pred_check
          %p265 = pneg %p71
        $region52: #{yolov1_forward.1} parent=23 // pred_check_branch
          %267 = sbr.rel (%p265) target = $region54
        $region53: #{yolov1_forward.1} parent=23 // pred_region
          %s268 = smul.u32 48, %s19
          %p269 = scmp.lt.s32.totalorder %s268, 143
          %s270 = scalar_select %p269, %s268, 143
          %s271 = smul.addr %s270, 4
          %s272 = scalar_lea.vmem %s1, %s271
          %s273 = smul.u32 48, %s19
        $region54: #{yolov1_forward.1} parent=23 // pred_fallthru
          _
        // Predicated region
        $region55: #{yolov1_forward.1} parent=23 // pred_check
          %p274 = pneg %p139
        $region56: #{yolov1_forward.1} parent=23 // pred_check_branch
          %276 = sbr.rel (%p274) target = $region58
        $region57: #{yolov1_forward.1} parent=23 // pred_region
          %s277 = smul.u32 8, %s18
          %p278 = scmp.lt.s32.totalorder %s277, 15
          %s279 = scalar_select %p278, %s277, 15
          %s280 = smul.addr %s279, 8
          %s281 = scalar_lea.vmem %s4, %s280
          %s282 = smul.u32 8, %s18
        $region58: #{yolov1_forward.1} parent=23 // pred_fallthru
          _
      $region24: #{yolov1_forward.1} parent=5 // pred_fallthru
        _
      %p283 = scmp.le.s32.totalorder 1, %s11
      %p284 = scmp.lt.s32.totalorder %s11, 7
      %p285 = pnand %p283, %p284
      %p286 = pneg %p285
      // Predicated region
      $region59: #{yolov1_forward.1} parent=5 // pred_check
        _
      $region60: #{yolov1_forward.1} parent=5 // pred_check_branch
        %288 = sbr.rel (%p285) target = $region62
      $region61: #{yolov1_forward.1} parent=5 // pred_region
        %s289 = ssub.s32 %s11, 1
        %s290 = sand.u32 %s38, 1
        %s291 = sand.u32 %s38, 1
        %s292 = smul.addr %s291, 96
        %s293 = scalar_lea.vmem [#allocation3], %s292
        // Predicated region
        $region63: #{yolov1_forward.1} parent=61 // pred_check
          %p294 = pneg %p51
        $region64: #{yolov1_forward.1} parent=61 // pred_check_branch
          %296 = sbr.rel (%p294) target = $region66
        $region65: #{yolov1_forward.1} parent=61 // pred_region
          _
        $region66: #{yolov1_forward.1} parent=61 // pred_fallthru
          _
        %s297 = sand.u32 %s38, 1
        %s298 = sand.u32 %s38, 1
        %s299 = smul.addr %s298, 96
        %s300 = scalar_lea.vmem [#allocation3], %s299
        %p301 = pneg %p51
        %p302 = pneg %p48
        %s303 = smul.u32 48, %s21
        %p304 = scmp.lt.s32.totalorder %s303, 143
        %s305 = scalar_select %p304, %s303, 143
        %s306 = smul.addr %s305, 4
        %s307 = scalar_lea.vmem %s1, %s306
        %p308 = pneg %p77
        %p309 = pneg %p74
        %p310 = pneg %p98
        %p311 = pneg %p95
        %p312 = pneg %p119
        %p313 = pneg %p116
        %s314 = smul.u32 8, %s20
        %p315 = scmp.lt.s32.totalorder %s314, 15
        %s316 = scalar_select %p315, %s314, 15
        %s317 = smul.addr %s316, 8
        %s318 = scalar_lea.vmem %s4, %s317
        %p319 = pneg %p145
        %p320 = pneg %p142
        %p321 = pneg %p171
        %p322 = pneg %p168
        %s323 = smul.u32 8, %s20
        %p324 = scmp.lt.s32.totalorder %s323, 15
        %s325 = scalar_select %p324, %s323, 15
        %s326 = smul.addr %s325, 8
        %s327 = scalar_lea.vmem %s5, %s326
        %s328 = smul.u32 8, %s20
        %s329 = smul.u32 3, %s21
        %s330 = smul.u32 48, %s21
        %p331 = scmp.lt.s32.totalorder %s330, 143
        %s332 = scalar_select %p331, %s330, 143
        %s333 = smul.addr %s332, 4
        %s334 = scalar_lea.vmem %s1, %s333
        %s335 = smul.u32 48, %s21
        %s336 = smul.u32 8, %s20
        %p337 = scmp.lt.s32.totalorder %s336, 15
        %s338 = scalar_select %p337, %s336, 15
        %s339 = smul.addr %s338, 8
        %s340 = scalar_lea.vmem %s4, %s339
        %s341 = smul.u32 8, %s20
        %s342 = smul.u32 8, %s20
        %p343 = scmp.lt.s32.totalorder %s342, 15
        %s344 = scalar_select %p343, %s342, 15
        %s345 = smul.addr %s344, 8
        %s346 = scalar_lea.vmem %s5, %s345
        %s347 = smul.u32 8, %s20
        %p349 = scmp.eq.s32.totalorder %s21, 0
        // Predicated region
        $region67: #{yolov1_forward.1} parent=61 // pred_check
          %p350 = pneg %p349
        $region68: #{yolov1_forward.1} parent=61 // pred_check_branch
          %352 = sbr.rel (%p350) target = $region70
        $region69: #{yolov1_forward.1} parent=61 // pred_region
          %353 = vst [vmem:[#allocation2] sm:$0xff] 0.0
          %354 = vst [vmem:[#allocation2 + $0x8] sm:$0xff] 0.0
          %355 = vst [vmem:[#allocation2 + $0x10] sm:$0xff] 0.0
          %356 = vst [vmem:[#allocation2 + $0x18] sm:$0xff] 0.0
          %357 = vst [vmem:[#allocation2 + $0x20] sm:$0xff] 0.0
          %358 = vst [vmem:[#allocation2 + $0x28] sm:$0xff] 0.0
          %359 = vst [vmem:[#allocation2 + $0x30] sm:$0xff] 0.0
          %360 = vst [vmem:[#allocation2 + $0x38] sm:$0xff] 0.0
        $region70: #{yolov1_forward.1} parent=61 // pred_fallthru
          _
        %v361 = vld [vmem:[#allocation2] sm:$0xff]
        %v362 = vld [vmem:[#allocation2 + $0x8] sm:$0xff]
        %v363 = vld [vmem:[#allocation2 + $0x10] sm:$0xff]
        %v364 = vld [vmem:[#allocation2 + $0x18] sm:$0xff]
        %v365 = vld [vmem:[#allocation2 + $0x20] sm:$0xff]
        %v366 = vld [vmem:[#allocation2 + $0x28] sm:$0xff]
        %v367 = vld [vmem:[#allocation2 + $0x30] sm:$0xff]
        %v368 = vld [vmem:[#allocation2 + $0x38] sm:$0xff]
        %v369 = vld [vmem:[%s293] sm:$0xff]
        %v370 = vld [vmem:[%s293 + $0x8] sm:$0xf]
        %v371 = vld [vmem:[%s293 + $0xc] sm:$0xff]
        %v372 = vld [vmem:[%s293 + $0x14] sm:$0xf]
        %v373 = vld [vmem:[%s293 + $0x18] sm:$0xff]
        %v374 = vld [vmem:[%s293 + $0x20] sm:$0xf]
        %v375 = vld [vmem:[%s293 + $0x24] sm:$0xff]
        %v376 = vld [vmem:[%s293 + $0x2c] sm:$0xf]
        %v377 = vld [vmem:[%s293 + $0x30] sm:$0xff]
        %v378 = vld [vmem:[%s293 + $0x38] sm:$0xf]
        %v379 = vld [vmem:[%s293 + $0x3c] sm:$0xff]
        %v380 = vld [vmem:[%s293 + $0x44] sm:$0xf]
        %v381 = vld [vmem:[%s293 + $0x48] sm:$0xff]
        %v382 = vld [vmem:[%s293 + $0x50] sm:$0xf]
        %v383 = vld [vmem:[%s293 + $0x54] sm:$0xff]
        %v384 = vld [vmem:[%s293 + $0x5c] sm:$0xf]
        %v385 = vld [vmem:[%s334] sm:$0xf]
        %v386 = vld [vmem:[%s334 + $0x4] sm:$0xf]
        %v387 = vld [vmem:[%s334 + $0x8] sm:$0xf]
        %v388 = vld [vmem:[%s334 + $0xc] sm:$0xf]
        %v389 = vld [vmem:[%s334 + $0x10] sm:$0xf]
        %v390 = vld [vmem:[%s334 + $0x14] sm:$0xf]
        %v391 = vld [vmem:[%s334 + $0x18] sm:$0xf]
        %v392 = vld [vmem:[%s334 + $0x1c] sm:$0xf]
        %v393 = vld [vmem:[%s334 + $0x20] sm:$0xf]
        %v394 = vld [vmem:[%s334 + $0x24] sm:$0xf]
        %v395 = vld [vmem:[%s334 + $0x28] sm:$0xf]
        %v396 = vld [vmem:[%s334 + $0x2c] sm:$0xf]
        %v397 = vld [vmem:[%s334 + $0x30] sm:$0xf]
        %v398 = vld [vmem:[%s334 + $0x34] sm:$0xf]
        %v399 = vld [vmem:[%s334 + $0x38] sm:$0xf]
        %v400 = vld [vmem:[%s334 + $0x3c] sm:$0xf]
        %v401 = vld [vmem:[%s334 + $0x40] sm:$0xf]
        %v402 = vld [vmem:[%s334 + $0x44] sm:$0xf]
        %v403 = vld [vmem:[%s334 + $0x48] sm:$0xf]
        %v404 = vld [vmem:[%s334 + $0x4c] sm:$0xf]
        %v405 = vld [vmem:[%s334 + $0x50] sm:$0xf]
        %v406 = vld [vmem:[%s334 + $0x54] sm:$0xf]
        %v407 = vld [vmem:[%s334 + $0x58] sm:$0xf]
        %v408 = vld [vmem:[%s334 + $0x5c] sm:$0xf]
        %v409 = vld [vmem:[%s334 + $0x60] sm:$0xf]
        %v410 = vld [vmem:[%s334 + $0x64] sm:$0xf]
        %v411 = vld [vmem:[%s334 + $0x68] sm:$0xf]
        %v412 = vld [vmem:[%s334 + $0x6c] sm:$0xf]
        %v413 = vld [vmem:[%s334 + $0x70] sm:$0xf]
        %v414 = vld [vmem:[%s334 + $0x74] sm:$0xf]
        %v415 = vld [vmem:[%s334 + $0x78] sm:$0xf]
        %v416 = vld [vmem:[%s334 + $0x7c] sm:$0xf]
        %v417 = vld [vmem:[%s334 + $0x80] sm:$0xf]
        %v418 = vld [vmem:[%s334 + $0x84] sm:$0xf]
        %v419 = vld [vmem:[%s334 + $0x88] sm:$0xf]
        %v420 = vld [vmem:[%s334 + $0x8c] sm:$0xf]
        %v421 = vld [vmem:[%s334 + $0x90] sm:$0xf]
        %v422 = vld [vmem:[%s334 + $0x94] sm:$0xf]
        %v423 = vld [vmem:[%s334 + $0x98] sm:$0xf]
        %v424 = vld [vmem:[%s334 + $0x9c] sm:$0xf]
        %v425 = vld [vmem:[%s334 + $0xa0] sm:$0xf]
        %v426 = vld [vmem:[%s334 + $0xa4] sm:$0xf]
        %v427 = vld [vmem:[%s334 + $0xa8] sm:$0xf]
        %v428 = vld [vmem:[%s334 + $0xac] sm:$0xf]
        %v429 = vld [vmem:[%s334 + $0xb0] sm:$0xf]
        %v430 = vld [vmem:[%s334 + $0xb4] sm:$0xf]
        %v431 = vld [vmem:[%s334 + $0xb8] sm:$0xf]
        %v432 = vld [vmem:[%s334 + $0xbc] sm:$0xf]
        %v449 = vunpack.c.l.b16 %v369
        %v450 = vunpack.c.h.b16 %v369
        %v451 = vunpack.c.l.b16 %v370
        %v452 = vunpack.c.l.b16 %v371
        %v453 = vunpack.c.h.b16 %v371
        %v454 = vunpack.c.l.b16 %v372
        %v455 = vunpack.c.l.b16 %v373
        %v456 = vunpack.c.h.b16 %v373
        %v457 = vunpack.c.l.b16 %v374
        %v458 = vunpack.c.l.b16 %v375
        %v459 = vunpack.c.h.b16 %v375
        %v460 = vunpack.c.l.b16 %v376
        %v461 = vunpack.c.l.b16 %v377
        %v462 = vunpack.c.h.b16 %v377
        %v463 = vunpack.c.l.b16 %v378
        %v464 = vunpack.c.l.b16 %v379
        %v465 = vunpack.c.h.b16 %v379
        %v466 = vunpack.c.l.b16 %v380
        %v467 = vunpack.c.l.b16 %v381
        %v468 = vunpack.c.h.b16 %v381
        %v469 = vunpack.c.l.b16 %v382
        %v470 = vunpack.c.l.b16 %v383
        %v471 = vunpack.c.h.b16 %v383
        %v472 = vunpack.c.l.b16 %v384
        %v473 = vpack.c.b16 %v452, %v449
        %v474 = vpack.c.b16 %v453, %v450
        %v475 = vpack.c.b16 %v454, %v451
        %v476 = vpack.c.b16 %v458, %v455
        %v477 = vpack.c.b16 %v459, %v456
        %v478 = vpack.c.b16 %v460, %v457
        %v479 = vpack.c.b16 %v464, %v461
        %v480 = vpack.c.b16 %v465, %v462
        %v481 = vpack.c.b16 %v466, %v463
        %v482 = vpack.c.b16 %v470, %v467
        %v483 = vpack.c.b16 %v471, %v468
        %v484 = vpack.c.b16 %v472, %v469
        %v545 = vunpack.c.l.b16 %v385
        %v546 = vunpack.c.l.b16 %v386
        %v547 = vunpack.c.l.b16 %v387
        %v548 = vunpack.c.l.b16 %v388
        %v549 = vunpack.c.l.b16 %v389
        %v550 = vunpack.c.l.b16 %v390
        %v551 = vunpack.c.l.b16 %v391
        %v552 = vunpack.c.l.b16 %v392
        %v553 = vunpack.c.l.b16 %v393
        %v554 = vunpack.c.l.b16 %v394
        %v555 = vunpack.c.l.b16 %v395
        %v556 = vunpack.c.l.b16 %v396
        %v557 = vunpack.c.l.b16 %v397
        %v558 = vunpack.c.l.b16 %v398
        %v559 = vunpack.c.l.b16 %v399
        %v560 = vunpack.c.l.b16 %v400
        %v561 = vunpack.c.l.b16 %v401
        %v562 = vunpack.c.l.b16 %v402
        %v563 = vunpack.c.l.b16 %v403
        %v564 = vunpack.c.l.b16 %v404
        %v565 = vunpack.c.l.b16 %v405
        %v566 = vunpack.c.l.b16 %v406
        %v567 = vunpack.c.l.b16 %v407
        %v568 = vunpack.c.l.b16 %v408
        %v569 = vunpack.c.l.b16 %v409
        %v570 = vunpack.c.l.b16 %v410
        %v571 = vunpack.c.l.b16 %v411
        %v572 = vunpack.c.l.b16 %v412
        %v573 = vunpack.c.l.b16 %v413
        %v574 = vunpack.c.l.b16 %v414
        %v575 = vunpack.c.l.b16 %v415
        %v576 = vunpack.c.l.b16 %v416
        %v577 = vunpack.c.l.b16 %v417
        %v578 = vunpack.c.l.b16 %v418
        %v579 = vunpack.c.l.b16 %v419
        %v580 = vunpack.c.l.b16 %v420
        %v581 = vunpack.c.l.b16 %v421
        %v582 = vunpack.c.l.b16 %v422
        %v583 = vunpack.c.l.b16 %v423
        %v584 = vunpack.c.l.b16 %v424
        %v585 = vunpack.c.l.b16 %v425
        %v586 = vunpack.c.l.b16 %v426
        %v587 = vunpack.c.l.b16 %v427
        %v588 = vunpack.c.l.b16 %v428
        %v589 = vunpack.c.l.b16 %v429
        %v590 = vunpack.c.l.b16 %v430
        %v591 = vunpack.c.l.b16 %v431
        %v592 = vunpack.c.l.b16 %v432
        %v593 = vpack.c.b16 %v546, %v545
        %v594 = vpack.c.b16 %v548, %v547
        %v595 = vpack.c.b16 %v550, %v549
        %v596 = vpack.c.b16 %v552, %v551
        %v597 = vpack.c.b16 %v554, %v553
        %v598 = vpack.c.b16 %v556, %v555
        %v599 = vpack.c.b16 %v558, %v557
        %v600 = vpack.c.b16 %v560, %v559
        %v601 = vpack.c.b16 %v562, %v561
        %v602 = vpack.c.b16 %v564, %v563
        %v603 = vpack.c.b16 %v566, %v565
        %v604 = vpack.c.b16 %v568, %v567
        %v605 = vpack.c.b16 %v570, %v569
        %v606 = vpack.c.b16 %v572, %v571
        %v607 = vpack.c.b16 %v574, %v573
        %v608 = vpack.c.b16 %v576, %v575
        %v609 = vpack.c.b16 %v578, %v577
        %v610 = vpack.c.b16 %v580, %v579
        %v611 = vpack.c.b16 %v582, %v581
        %v612 = vpack.c.b16 %v584, %v583
        %v613 = vpack.c.b16 %v586, %v585
        %v614 = vpack.c.b16 %v588, %v587
        %v615 = vpack.c.b16 %v590, %v589
        %v616 = vpack.c.b16 %v592, %v591
        %641 = vmatprep.subr.bf16.mxu0 0
        %642 = vmatpush1.bf16.msra.mxu0 %v593
        %643 = vmatprep.subr.bf16.mxu0 0
        %644 = vmatpush1.bf16.msra.mxu0 %v594
        %645 = vmatprep.subr.bf16.mxu0 0
        %646 = vmatpush1.bf16.msra.mxu0 %v595
        %647 = vmatprep.subr.bf16.mxu0 0
        %648 = vmatpush1.bf16.msra.mxu0 %v596
        %649 = vmatprep.subr.bf16.mxu0 0
        %650 = vmatpush1.bf16.msra.mxu0 %v597
        %651 = vmatprep.subr.bf16.mxu0 0
        %652 = vmatpush1.bf16.msra.mxu0 %v598
        %653 = vmatprep.subr.bf16.mxu0 0
        %654 = vmatpush1.bf16.msra.mxu0 %v599
        %655 = vmatprep.subr.bf16.mxu0 0
        %656 = vmatpush1.bf16.msra.mxu0 %v600
        %657 = vmatprep.subr.bf16.mxu0 0
        %658 = vmatpush1.bf16.msra.mxu0 %v601
        %659 = vmatprep.subr.bf16.mxu0 0
        %660 = vmatpush1.bf16.msra.mxu0 %v602
        %661 = vmatprep.subr.bf16.mxu0 0
        %662 = vmatpush1.bf16.msra.mxu0 %v603
        %663 = vmatprep.subr.bf16.mxu0 0
        %664 = vmatpush1.bf16.msra.mxu0 %v604
        %665 = vmatprep.subr.bf16.mxu0 0
        %666 = vmatpush1.bf16.msra.mxu0 %v605
        %667 = vmatprep.subr.bf16.mxu0 0
        %668 = vmatpush1.bf16.msra.mxu0 %v606
        %669 = vmatprep.subr.bf16.mxu0 0
        %670 = vmatpush1.bf16.msra.mxu0 %v607
        %671 = vmatprep.subr.bf16.mxu0 0
        %672 = vmatpush1.bf16.msra.mxu0 %v608
        %673 = vmatprep.mubr.bf16.mxu0 %v474
        %674 = vmatmul.mubr.bf16.gmra.mrb[0].mxu0 %v473
        %v675 = vpop.f32.mrb[0].mxu0
        %v676 = vadd.f32 0.0, %v675
        %v677 = vpop.f32.mrb[0].mxu0
        %v678 = vpop.f32.mrb[0].mxu0
        %v679 = vadd.f32 0.0, %v678
        %v680 = vpop.f32.mrb[0].mxu0
        %681 = vmatprep.mubr.bf16.mxu0 %v477
        %682 = vmatmul.mubr.bf16.gmra.mrb[0].mxu0 %v476
        %v683 = vpop.f32.mrb[0].mxu0
        %v684 = vadd.f32 0.0, %v683
        %v685 = vpop.f32.mrb[0].mxu0
        %v686 = vpop.f32.mrb[0].mxu0
        %v687 = vadd.f32 0.0, %v686
        %v688 = vpop.f32.mrb[0].mxu0
        %689 = vmatprep.mubr.bf16.mxu0 %v480
        %690 = vmatmul.mubr.bf16.gmra.mrb[0].mxu0 %v479
        %v691 = vpop.f32.mrb[0].mxu0
        %v692 = vadd.f32 0.0, %v691
        %v693 = vpop.f32.mrb[0].mxu0
        %v694 = vpop.f32.mrb[0].mxu0
        %v695 = vadd.f32 0.0, %v694
        %v696 = vpop.f32.mrb[0].mxu0
        %697 = vmatprep.mubr.bf16.mxu0 %v483
        %698 = vmatmul.mubr.bf16.gmra.mrb[0].mxu0 %v482
        %v699 = vpop.f32.mrb[0].mxu0
        %v700 = vadd.f32 0.0, %v699
        %v701 = vpop.f32.mrb[0].mxu0
        %v702 = vpop.f32.mrb[0].mxu0
        %v703 = vadd.f32 0.0, %v702
        %v704 = vpop.f32.mrb[0].mxu0
        %705 = vdwg.mxu0
        %706 = vmatprep.subr.bf16.mxu0 0
        %707 = vmatpush1.bf16.msra.mxu0 %v609
        %708 = vmatprep.subr.bf16.mxu0 0
        %709 = vmatpush1.bf16.msra.mxu0 %v610
        %710 = vmatprep.subr.bf16.mxu0 0
        %711 = vmatpush1.bf16.msra.mxu0 %v611
        %712 = vmatprep.subr.bf16.mxu0 0
        %713 = vmatpush1.bf16.msra.mxu0 %v612
        %714 = vmatprep.subr.bf16.mxu0 0
        %715 = vmatpush1.bf16.msra.mxu0 %v613
        %716 = vmatprep.subr.bf16.mxu0 0
        %717 = vmatpush1.bf16.msra.mxu0 %v614
        %718 = vmatprep.subr.bf16.mxu0 0
        %719 = vmatpush1.bf16.msra.mxu0 %v615
        %720 = vmatprep.subr.bf16.mxu0 0
        %721 = vmatpush1.bf16.msra.mxu0 %v616
        %722 = vmatprep.subr.bf16.mxu0 0
        %723 = vmatpush1.bf16.msra.mxu0 0
        %724 = vmatprep.subr.bf16.mxu0 0
        %725 = vmatpush1.bf16.msra.mxu0 0
        %726 = vmatprep.subr.bf16.mxu0 0
        %727 = vmatpush1.bf16.msra.mxu0 0
        %728 = vmatprep.subr.bf16.mxu0 0
        %729 = vmatpush1.bf16.msra.mxu0 0
        %730 = vmatprep.subr.bf16.mxu0 0
        %731 = vmatpush1.bf16.msra.mxu0 0
        %732 = vmatprep.subr.bf16.mxu0 0
        %733 = vmatpush1.bf16.msra.mxu0 0
        %734 = vmatprep.subr.bf16.mxu0 0
        %735 = vmatpush1.bf16.msra.mxu0 0
        %736 = vmatprep.subr.bf16.mxu0 0
        %737 = vmatpush1.bf16.msra.mxu0 0
        %738 = vmatprep.mubr.bf16.mxu0 0
        %739 = vmatmul.mubr.bf16.gmra.mrb[0].mxu0 %v475
        %v740 = vpop.f32.mrb[0].mxu0
        %v741 = vadd.f32 %v676, %v740
        %v742 = vpop.f32.mrb[0].mxu0
        %v743 = vpop.f32.mrb[0].mxu0
        %v744 = vadd.f32 %v679, %v743
        %v745 = vpop.f32.mrb[0].mxu0
        %746 = vmatprep.mubr.bf16.mxu0 0
        %747 = vmatmul.mubr.bf16.gmra.mrb[0].mxu0 %v478
        %v748 = vpop.f32.mrb[0].mxu0
        %v749 = vadd.f32 %v684, %v748
        %v750 = vpop.f32.mrb[0].mxu0
        %v751 = vpop.f32.mrb[0].mxu0
        %v752 = vadd.f32 %v687, %v751
        %v753 = vpop.f32.mrb[0].mxu0
        %754 = vmatprep.mubr.bf16.mxu0 0
        %755 = vmatmul.mubr.bf16.gmra.mrb[0].mxu0 %v481
        %v756 = vpop.f32.mrb[0].mxu0
        %v757 = vadd.f32 %v692, %v756
        %v758 = vpop.f32.mrb[0].mxu0
        %v759 = vpop.f32.mrb[0].mxu0
        %v760 = vadd.f32 %v695, %v759
        %v761 = vpop.f32.mrb[0].mxu0
        %762 = vmatprep.mubr.bf16.mxu0 0
        %763 = vmatmul.mubr.bf16.gmra.mrb[0].mxu0 %v484
        %v764 = vpop.f32.mrb[0].mxu0
        %v765 = vadd.f32 %v700, %v764
        %v766 = vpop.f32.mrb[0].mxu0
        %v767 = vpop.f32.mrb[0].mxu0
        %v768 = vadd.f32 %v703, %v767
        %v769 = vpop.f32.mrb[0].mxu0
        %770 = vdwg.mxu0
        %v771 = vadd.f32 %v361, %v741
        %v772 = vadd.f32 %v362, %v744
        %v773 = vadd.f32 %v363, %v749
        %v774 = vadd.f32 %v364, %v752
        %v775 = vadd.f32 %v365, %v757
        %v776 = vadd.f32 %v366, %v760
        %v777 = vadd.f32 %v367, %v765
        %v778 = vadd.f32 %v368, %v768
        %779 = vst [vmem:[#allocation2] sm:$0xff] %v771
        %780 = vst [vmem:[#allocation2 + $0x8] sm:$0xff] %v772
        %781 = vst [vmem:[#allocation2 + $0x10] sm:$0xff] %v773
        %782 = vst [vmem:[#allocation2 + $0x18] sm:$0xff] %v774
        %783 = vst [vmem:[#allocation2 + $0x20] sm:$0xff] %v775
        %784 = vst [vmem:[#allocation2 + $0x28] sm:$0xff] %v776
        %785 = vst [vmem:[#allocation2 + $0x30] sm:$0xff] %v777
        %786 = vst [vmem:[#allocation2 + $0x38] sm:$0xff] %v778
        %p787 = scmp.eq.s32.totalorder %s21, 2
        // Predicated region
        $region71: #{yolov1_forward.1} parent=61 // pred_check
          %p788 = pneg %p787
        $region72: #{yolov1_forward.1} parent=61 // pred_check_branch
          %790 = sbr.rel (%p788) target = $region74
        $region73: #{yolov1_forward.1} parent=61 // pred_region
          %v791 = vld [vmem:[#allocation2] sm:$0xff]
          %v792 = vld [vmem:[#allocation2 + $0x8] sm:$0xff]
          %v793 = vld [vmem:[#allocation2 + $0x10] sm:$0xff]
          %v794 = vld [vmem:[#allocation2 + $0x18] sm:$0xff]
          %v795 = vld [vmem:[#allocation2 + $0x20] sm:$0xff]
          %v796 = vld [vmem:[#allocation2 + $0x28] sm:$0xff]
          %v797 = vld [vmem:[#allocation2 + $0x30] sm:$0xff]
          %v798 = vld [vmem:[#allocation2 + $0x38] sm:$0xff]
          %v799 = vmul.f32 %v791, 0.1
          %v800 = vmul.f32 %v792, 0.1
          %v801 = vmul.f32 %v793, 0.1
          %v802 = vmul.f32 %v794, 0.1
          %v803 = vmul.f32 %v795, 0.1
          %v804 = vmul.f32 %v796, 0.1
          %v805 = vmul.f32 %v797, 0.1
          %v806 = vmul.f32 %v798, 0.1
          %v807 = vmax.f32 %v791, %v799
          %v808 = vmax.f32 %v792, %v800
          %v809 = vmax.f32 %v793, %v801
          %v810 = vmax.f32 %v794, %v802
          %v811 = vmax.f32 %v795, %v803
          %v812 = vmax.f32 %v796, %v804
          %v813 = vmax.f32 %v797, %v805
          %v814 = vmax.f32 %v798, %v806
          %v815 = vpack.c.bf16 %v808, %v807
          %v816 = vpack.c.bf16 %v810, %v809
          %v817 = vpack.c.bf16 %v812, %v811
          %v818 = vpack.c.bf16 %v814, %v813
          %v819 = vld [vmem:[%s2] sm:$0xf]
          %v820 = vld [vmem:[%s2 + $0x4] sm:$0xf]
          %v821 = vld [vmem:[%s2 + $0x8] sm:$0xf]
          %v822 = vld [vmem:[%s2 + $0xc] sm:$0xf]
          %v823 = vld [vmem:[%s2 + $0x10] sm:$0xf]
          %v824 = vld [vmem:[%s2 + $0x14] sm:$0xf]
          %v825 = vld [vmem:[%s2 + $0x18] sm:$0xf]
          %v826 = vld [vmem:[%s2 + $0x1c] sm:$0xf]
          %v827 = vld [vmem:[%s2 + $0x20] sm:$0xf]
          %v828 = vld [vmem:[%s2 + $0x24] sm:$0xf]
          %v829 = vld [vmem:[%s2 + $0x28] sm:$0xf]
          %v830 = vld [vmem:[%s2 + $0x2c] sm:$0xf]
          %v831 = vld [vmem:[%s2 + $0x30] sm:$0xf]
          %v832 = vld [vmem:[%s2 + $0x34] sm:$0xf]
          %v833 = vld [vmem:[%s2 + $0x38] sm:$0xf]
          %v834 = vld [vmem:[%s2 + $0x3c] sm:$0xf]
          %v835 = vld [vmem:[%s3] sm:$0x1]
          %v837 = vlaneseq
          %v838 = vshrl.u32 %v837, 7
          %v839 = vsub.s32 0, %v838
          %v840 = vrot.slane %v835, %v839
          %v858 = vunpack.c.l.b16 %v819
          %v859 = vunpack.c.l.b16 %v820
          %v860 = vunpack.c.l.b16 %v821
          %v861 = vunpack.c.l.b16 %v822
          %v862 = vunpack.c.l.b16 %v823
          %v863 = vunpack.c.l.b16 %v824
          %v864 = vunpack.c.l.b16 %v825
          %v865 = vunpack.c.l.b16 %v826
          %v866 = vunpack.c.l.b16 %v827
          %v867 = vunpack.c.l.b16 %v828
          %v868 = vunpack.c.l.b16 %v829
          %v869 = vunpack.c.l.b16 %v830
          %v870 = vunpack.c.l.b16 %v831
          %v871 = vunpack.c.l.b16 %v832
          %v872 = vunpack.c.l.b16 %v833
          %v873 = vunpack.c.l.b16 %v834
          %v874 = vpack.c.b16 %v859, %v858
          %v875 = vpack.c.b16 %v861, %v860
          %v876 = vpack.c.b16 %v863, %v862
          %v877 = vpack.c.b16 %v865, %v864
          %v878 = vpack.c.b16 %v867, %v866
          %v879 = vpack.c.b16 %v869, %v868
          %v880 = vpack.c.b16 %v871, %v870
          %v881 = vpack.c.b16 %v873, %v872
          %890 = vmatprep.subr.bf16.mxu0 0
          %891 = vmatpush1.bf16.msra.mxu0 %v874
          %892 = vmatprep.subr.bf16.mxu0 0
          %893 = vmatpush1.bf16.msra.mxu0 %v875
          %894 = vmatprep.subr.bf16.mxu0 0
          %895 = vmatpush1.bf16.msra.mxu0 %v876
          %896 = vmatprep.subr.bf16.mxu0 0
          %897 = vmatpush1.bf16.msra.mxu0 %v877
          %898 = vmatprep.subr.bf16.mxu0 0
          %899 = vmatpush1.bf16.msra.mxu0 %v878
          %900 = vmatprep.subr.bf16.mxu0 0
          %901 = vmatpush1.bf16.msra.mxu0 %v879
          %902 = vmatprep.subr.bf16.mxu0 0
          %903 = vmatpush1.bf16.msra.mxu0 %v880
          %904 = vmatprep.subr.bf16.mxu0 0
          %905 = vmatpush1.bf16.msra.mxu0 %v881
          %906 = vmatprep.subr.bf16.mxu0 0
          %907 = vmatpush1.bf16.msra.mxu0 0
          %908 = vmatprep.subr.bf16.mxu0 0
          %909 = vmatpush1.bf16.msra.mxu0 0
          %910 = vmatprep.subr.bf16.mxu0 0
          %911 = vmatpush1.bf16.msra.mxu0 0
          %912 = vmatprep.subr.bf16.mxu0 0
          %913 = vmatpush1.bf16.msra.mxu0 0
          %914 = vmatprep.subr.bf16.mxu0 0
          %915 = vmatpush1.bf16.msra.mxu0 0
          %916 = vmatprep.subr.bf16.mxu0 0
          %917 = vmatpush1.bf16.msra.mxu0 0
          %918 = vmatprep.subr.bf16.mxu0 0
          %919 = vmatpush1.bf16.msra.mxu0 0
          %920 = vmatprep.subr.bf16.mxu0 0
          %921 = vmatpush1.bf16.msra.mxu0 0
          %922 = vmatprep.mubr.bf16.mxu0 0
          %923 = vmatmul.mubr.bf16.gmra.mrb[0].mxu0 %v815
          %v924 = vpop.f32.mrb[0].mxu0
          %v925 = vadd.f32 %v840, %v924
          %v926 = vpop.f32.mrb[0].mxu0
          %v927 = vpop.f32.mrb[0].mxu0
          %v928 = vadd.f32 %v840, %v927
          %v929 = vpop.f32.mrb[0].mxu0
          %930 = vmatprep.mubr.bf16.mxu0 0
          %931 = vmatmul.mubr.bf16.gmra.mrb[0].mxu0 %v816
          %v932 = vpop.f32.mrb[0].mxu0
          %v933 = vadd.f32 %v840, %v932
          %v934 = vpop.f32.mrb[0].mxu0
          %v935 = vpop.f32.mrb[0].mxu0
          %v936 = vadd.f32 %v840, %v935
          %v937 = vpop.f32.mrb[0].mxu0
          %938 = vmatprep.mubr.bf16.mxu0 0
          %939 = vmatmul.mubr.bf16.gmra.mrb[0].mxu0 %v817
          %v940 = vpop.f32.mrb[0].mxu0
          %v941 = vadd.f32 %v840, %v940
          %v942 = vpop.f32.mrb[0].mxu0
          %v943 = vpop.f32.mrb[0].mxu0
          %v944 = vadd.f32 %v840, %v943
          %v945 = vpop.f32.mrb[0].mxu0
          %946 = vmatprep.mubr.bf16.mxu0 0
          %947 = vmatmul.mubr.bf16.gmra.mrb[0].mxu0 %v818
          %v948 = vpop.f32.mrb[0].mxu0
          %v949 = vadd.f32 %v840, %v948
          %v950 = vpop.f32.mrb[0].mxu0
          %v951 = vpop.f32.mrb[0].mxu0
          %v952 = vadd.f32 %v840, %v951
          %v953 = vpop.f32.mrb[0].mxu0
          %954 = vdwg.mxu0
          %v955 = vsub.f32 0.0, %v925
          %v956 = vsub.f32 0.0, %v928
          %v957 = vsub.f32 0.0, %v933
          %v958 = vsub.f32 0.0, %v936
          %v959 = vsub.f32 0.0, %v941
          %v960 = vsub.f32 0.0, %v944
          %v961 = vsub.f32 0.0, %v949
          %v962 = vsub.f32 0.0, %v952
          %v963 = vmul.f32 %v955, 1.442695
          %v964 = vpow.pop %v963
          %v965 = vmul.f32 %v956, 1.442695
          %v966 = vpow.pop %v965
          %v967 = vmul.f32 %v957, 1.442695
          %v968 = vpow.pop %v967
          %v969 = vmul.f32 %v958, 1.442695
          %v970 = vpow.pop %v969
          %v971 = vmul.f32 %v959, 1.442695
          %v972 = vpow.pop %v971
          %v973 = vmul.f32 %v960, 1.442695
          %v974 = vpow.pop %v973
          %v975 = vmul.f32 %v961, 1.442695
          %v976 = vpow.pop %v975
          %v977 = vmul.f32 %v962, 1.442695
          %v978 = vpow.pop %v977
          %v979 = vadd.f32 %v964, 1.0
          %v980 = vadd.f32 %v966, 1.0
          %v981 = vadd.f32 %v968, 1.0
          %v982 = vadd.f32 %v970, 1.0
          %v983 = vadd.f32 %v972, 1.0
          %v984 = vadd.f32 %v974, 1.0
          %v985 = vadd.f32 %v976, 1.0
          %v986 = vadd.f32 %v978, 1.0
          %v987 = vrcp.pop %v979
          %v988 = vmul.f32 1.0, %v987
          %v989 = vrcp.pop %v980
          %v990 = vmul.f32 1.0, %v989
          %v991 = vrcp.pop %v981
          %v992 = vmul.f32 1.0, %v991
          %v993 = vrcp.pop %v982
          %v994 = vmul.f32 1.0, %v993
          %v995 = vrcp.pop %v983
          %v996 = vmul.f32 1.0, %v995
          %v997 = vrcp.pop %v984
          %v998 = vmul.f32 1.0, %v997
          %v999 = vrcp.pop %v985
          %v1000 = vmul.f32 1.0, %v999
          %v1001 = vrcp.pop %v986
          %v1002 = vmul.f32 1.0, %v1001
          %vm1003 = vcmask 244816
          %v1004 = vsel %vm1003, %v925, -inf
          %1005 = vmax.xlane.f32.xlu0 %v1004
          %v1006 = vpop.xlane.xlu0 %1005
          %v1007 = vsel %vm1003, %v928, -inf
          %1008 = vmax.xlane.f32.xlu0 %v1007
          %v1009 = vpop.xlane.xlu0 %1008
          %v1010 = vsel %vm1003, %v933, -inf
          %1011 = vmax.xlane.f32.xlu0 %v1010
          %v1012 = vpop.xlane.xlu0 %1011
          %v1013 = vsel %vm1003, %v936, -inf
          %1014 = vmax.xlane.f32.xlu0 %v1013
          %v1015 = vpop.xlane.xlu0 %1014
          %v1016 = vsel %vm1003, %v941, -inf
          %1017 = vmax.xlane.f32.xlu0 %v1016
          %v1018 = vpop.xlane.xlu0 %1017
          %v1019 = vsel %vm1003, %v944, -inf
          %1020 = vmax.xlane.f32.xlu0 %v1019
          %v1021 = vpop.xlane.xlu0 %1020
          %v1022 = vsel %vm1003, %v949, -inf
          %1023 = vmax.xlane.f32.xlu0 %v1022
          %v1024 = vpop.xlane.xlu0 %1023
          %v1025 = vsel %vm1003, %v952, -inf
          %1026 = vmax.xlane.f32.xlu0 %v1025
          %v1027 = vpop.xlane.xlu0 %1026
          %v1028 = vsub.f32 %v925, %v1006
          %v1029 = vsub.f32 %v928, %v1009
          %v1030 = vsub.f32 %v933, %v1012
          %v1031 = vsub.f32 %v936, %v1015
          %v1032 = vsub.f32 %v941, %v1018
          %v1033 = vsub.f32 %v944, %v1021
          %v1034 = vsub.f32 %v949, %v1024
          %v1035 = vsub.f32 %v952, %v1027
          %v1036 = vmul.f32 %v1028, 1.442695
          %v1037 = vpow.pop %v1036
          %v1038 = vmul.f32 %v1029, 1.442695
          %v1039 = vpow.pop %v1038
          %v1040 = vmul.f32 %v1030, 1.442695
          %v1041 = vpow.pop %v1040
          %v1042 = vmul.f32 %v1031, 1.442695
          %v1043 = vpow.pop %v1042
          %v1044 = vmul.f32 %v1032, 1.442695
          %v1045 = vpow.pop %v1044
          %v1046 = vmul.f32 %v1033, 1.442695
          %v1047 = vpow.pop %v1046
          %v1048 = vmul.f32 %v1034, 1.442695
          %v1049 = vpow.pop %v1048
          %v1050 = vmul.f32 %v1035, 1.442695
          %v1051 = vpow.pop %v1050
          %1060 = vrot.lane.b32.xlu0 %v1037, 118
          %v1061 = vpop.permute.xlu0 %1060
          %1062 = vrot.lane.b32.xlu0 %v1039, 118
          %v1063 = vpop.permute.xlu0 %1062
          %1064 = vrot.lane.b32.xlu0 %v1041, 118
          %v1065 = vpop.permute.xlu0 %1064
          %1066 = vrot.lane.b32.xlu0 %v1043, 118
          %v1067 = vpop.permute.xlu0 %1066
          %1068 = vrot.lane.b32.xlu0 %v1045, 118
          %v1069 = vpop.permute.xlu0 %1068
          %1070 = vrot.lane.b32.xlu0 %v1047, 118
          %v1071 = vpop.permute.xlu0 %1070
          %1072 = vrot.lane.b32.xlu0 %v1049, 118
          %v1073 = vpop.permute.xlu0 %1072
          %1074 = vrot.lane.b32.xlu0 %v1051, 118
          %v1075 = vpop.permute.xlu0 %1074
          %vm1084 = vcmask 162816
          %v1085 = vsel %vm1084, %v1061, 0.0
          %1086 = vadd.xlane.f32.xlu0 %v1085
          %v1087 = vpop.xlane.xlu0 %1086
          %v1088 = vsel %vm1084, %v1063, 0.0
          %1089 = vadd.xlane.f32.xlu0 %v1088
          %v1090 = vpop.xlane.xlu0 %1089
          %v1091 = vsel %vm1084, %v1065, 0.0
          %1092 = vadd.xlane.f32.xlu0 %v1091
          %v1093 = vpop.xlane.xlu0 %1092
          %v1094 = vsel %vm1084, %v1067, 0.0
          %1095 = vadd.xlane.f32.xlu0 %v1094
          %v1096 = vpop.xlane.xlu0 %1095
          %v1097 = vsel %vm1084, %v1069, 0.0
          %1098 = vadd.xlane.f32.xlu0 %v1097
          %v1099 = vpop.xlane.xlu0 %1098
          %v1100 = vsel %vm1084, %v1071, 0.0
          %1101 = vadd.xlane.f32.xlu0 %v1100
          %v1102 = vpop.xlane.xlu0 %1101
          %v1103 = vsel %vm1084, %v1073, 0.0
          %1104 = vadd.xlane.f32.xlu0 %v1103
          %v1105 = vpop.xlane.xlu0 %1104
          %v1106 = vsel %vm1084, %v1075, 0.0
          %1107 = vadd.xlane.f32.xlu0 %v1106
          %v1108 = vpop.xlane.xlu0 %1107
          %v1109 = vrcp.pop %v1087
          %v1110 = vmul.f32 %v1037, %v1109
          %v1111 = vrcp.pop %v1090
          %v1112 = vmul.f32 %v1039, %v1111
          %v1113 = vrcp.pop %v1093
          %v1114 = vmul.f32 %v1041, %v1113
          %v1115 = vrcp.pop %v1096
          %v1116 = vmul.f32 %v1043, %v1115
          %v1117 = vrcp.pop %v1099
          %v1118 = vmul.f32 %v1045, %v1117
          %v1119 = vrcp.pop %v1102
          %v1120 = vmul.f32 %v1047, %v1119
          %v1121 = vrcp.pop %v1105
          %v1122 = vmul.f32 %v1049, %v1121
          %v1123 = vrcp.pop %v1108
          %v1124 = vmul.f32 %v1051, %v1123
          %v1125 = vld [vmem:[%s340] sm:$0xff]
          %v1126 = vld [vmem:[%s340 + $0x8] sm:$0xff]
          %v1127 = vld [vmem:[%s340 + $0x10] sm:$0xff]
          %v1128 = vld [vmem:[%s340 + $0x18] sm:$0xff]
          %v1129 = vld [vmem:[%s340 + $0x20] sm:$0xff]
          %v1130 = vld [vmem:[%s340 + $0x28] sm:$0xff]
          %v1131 = vld [vmem:[%s340 + $0x30] sm:$0xff]
          %v1132 = vld [vmem:[%s340 + $0x38] sm:$0xff]
          %v1133 = vmul.f32 %v988, 64.0
          %v1134 = vmul.f32 %v990, 64.0
          %v1135 = vmul.f32 %v992, 64.0
          %v1136 = vmul.f32 %v994, 64.0
          %v1137 = vmul.f32 %v996, 64.0
          %v1138 = vmul.f32 %v998, 64.0
          %v1139 = vmul.f32 %v1000, 64.0
          %v1140 = vmul.f32 %v1002, 64.0
          %v1141 = vadd.f32 %v1133, %v1125
          %v1142 = vadd.f32 %v1134, %v1126
          %v1143 = vadd.f32 %v1135, %v1127
          %v1144 = vadd.f32 %v1136, %v1128
          %v1145 = vadd.f32 %v1137, %v1129
          %v1146 = vadd.f32 %v1138, %v1130
          %v1147 = vadd.f32 %v1139, %v1131
          %v1148 = vadd.f32 %v1140, %v1132
          %v1149 = vmul.f32 %v988, 448.0
          %v1150 = vmul.f32 %v990, 448.0
          %v1151 = vmul.f32 %v992, 448.0
          %v1152 = vmul.f32 %v994, 448.0
          %v1153 = vmul.f32 %v996, 448.0
          %v1154 = vmul.f32 %v998, 448.0
          %v1155 = vmul.f32 %v1000, 448.0
          %v1156 = vmul.f32 %v1002, 448.0
          %v1157 = vmul.f32 %v1149, 0.5
          %v1158 = vmul.f32 %v1150, 0.5
          %v1159 = vmul.f32 %v1151, 0.5
          %v1160 = vmul.f32 %v1152, 0.5
          %v1161 = vmul.f32 %v1153, 0.5
          %v1162 = vmul.f32 %v1154, 0.5
          %v1163 = vmul.f32 %v1155, 0.5
          %v1164 = vmul.f32 %v1156, 0.5
          %1173 = vrot.lane.b32.xlu0 %v1157, 126
          %v1174 = vpop.permute.xlu0 %1173
          %1175 = vrot.lane.b32.xlu0 %v1158, 126
          %v1176 = vpop.permute.xlu0 %1175
          %1177 = vrot.lane.b32.xlu0 %v1159, 126
          %v1178 = vpop.permute.xlu0 %1177
          %1179 = vrot.lane.b32.xlu0 %v1160, 126
          %v1180 = vpop.permute.xlu0 %1179
          %1181 = vrot.lane.b32.xlu0 %v1161, 126
          %v1182 = vpop.permute.xlu0 %1181
          %1183 = vrot.lane.b32.xlu0 %v1162, 126
          %v1184 = vpop.permute.xlu0 %1183
          %1185 = vrot.lane.b32.xlu0 %v1163, 126
          %v1186 = vpop.permute.xlu0 %1185
          %1187 = vrot.lane.b32.xlu0 %v1164, 126
          %v1188 = vpop.permute.xlu0 %1187
          %v1197 = vsub.f32 %v1141, %v1174
          %v1198 = vsub.f32 %v1142, %v1176
          %v1199 = vsub.f32 %v1143, %v1178
          %v1200 = vsub.f32 %v1144, %v1180
          %v1201 = vsub.f32 %v1145, %v1182
          %v1202 = vsub.f32 %v1146, %v1184
          %v1203 = vsub.f32 %v1147, %v1186
          %v1204 = vsub.f32 %v1148, %v1188
          %v1205 = vadd.f32 %v1141, %v1174
          %v1206 = vadd.f32 %v1142, %v1176
          %v1207 = vadd.f32 %v1143, %v1178
          %v1208 = vadd.f32 %v1144, %v1180
          %v1209 = vadd.f32 %v1145, %v1182
          %v1210 = vadd.f32 %v1146, %v1184
          %v1211 = vadd.f32 %v1147, %v1186
          %v1212 = vadd.f32 %v1148, %v1188
          %1221 = vrot.lane.b32.xlu0 %v1125, 4
          %v1222 = vpop.permute.xlu0 %1221
          %1223 = vrot.lane.b32.xlu0 %v1126, 4
          %v1224 = vpop.permute.xlu0 %1223
          %1225 = vrot.lane.b32.xlu0 %v1127, 4
          %v1226 = vpop.permute.xlu0 %1225
          %1227 = vrot.lane.b32.xlu0 %v1128, 4
          %v1228 = vpop.permute.xlu0 %1227
          %1229 = vrot.lane.b32.xlu0 %v1129, 4
          %v1230 = vpop.permute.xlu0 %1229
          %1231 = vrot.lane.b32.xlu0 %v1130, 4
          %v1232 = vpop.permute.xlu0 %1231
          %1233 = vrot.lane.b32.xlu0 %v1131, 4
          %v1234 = vpop.permute.xlu0 %1233
          %1235 = vrot.lane.b32.xlu0 %v1132, 4
          %v1236 = vpop.permute.xlu0 %1235
          %v1245 = vadd.f32 %v1133, %v1222
          %v1246 = vadd.f32 %v1134, %v1224
          %v1247 = vadd.f32 %v1135, %v1226
          %v1248 = vadd.f32 %v1136, %v1228
          %v1249 = vadd.f32 %v1137, %v1230
          %v1250 = vadd.f32 %v1138, %v1232
          %v1251 = vadd.f32 %v1139, %v1234
          %v1252 = vadd.f32 %v1140, %v1236
          %v1253 = vsub.f32 %v1245, %v1174
          %v1254 = vsub.f32 %v1246, %v1176
          %v1255 = vsub.f32 %v1247, %v1178
          %v1256 = vsub.f32 %v1248, %v1180
          %v1257 = vsub.f32 %v1249, %v1182
          %v1258 = vsub.f32 %v1250, %v1184
          %v1259 = vsub.f32 %v1251, %v1186
          %v1260 = vsub.f32 %v1252, %v1188
          %v1261 = vadd.f32 %v1245, %v1174
          %v1262 = vadd.f32 %v1246, %v1176
          %v1263 = vadd.f32 %v1247, %v1178
          %v1264 = vadd.f32 %v1248, %v1180
          %v1265 = vadd.f32 %v1249, %v1182
          %v1266 = vadd.f32 %v1250, %v1184
          %v1267 = vadd.f32 %v1251, %v1186
          %v1268 = vadd.f32 %v1252, %v1188
          %1277 = vrot.lane.b32.xlu0 %v1205, 2
          %v1278 = vpop.permute.xlu0 %1277
          %1279 = vrot.lane.b32.xlu0 %v1206, 2
          %v1280 = vpop.permute.xlu0 %1279
          %1281 = vrot.lane.b32.xlu0 %v1207, 2
          %v1282 = vpop.permute.xlu0 %1281
          %1283 = vrot.lane.b32.xlu0 %v1208, 2
          %v1284 = vpop.permute.xlu0 %1283
          %1285 = vrot.lane.b32.xlu0 %v1209, 2
          %v1286 = vpop.permute.xlu0 %1285
          %1287 = vrot.lane.b32.xlu0 %v1210, 2
          %v1288 = vpop.permute.xlu0 %1287
          %1289 = vrot.lane.b32.xlu0 %v1211, 2
          %v1290 = vpop.permute.xlu0 %1289
          %1291 = vrot.lane.b32.xlu0 %v1212, 2
          %v1292 = vpop.permute.xlu0 %1291
          %1309 = vrot.lane.b32.xlu0 %v988, 124
          %v1310 = vpop.permute.xlu0 %1309
          %1311 = vrot.lane.b32.xlu0 %v990, 124
          %v1312 = vpop.permute.xlu0 %1311
          %1313 = vrot.lane.b32.xlu0 %v992, 124
          %v1314 = vpop.permute.xlu0 %1313
          %1315 = vrot.lane.b32.xlu0 %v994, 124
          %v1316 = vpop.permute.xlu0 %1315
          %1317 = vrot.lane.b32.xlu0 %v996, 124
          %v1318 = vpop.permute.xlu0 %1317
          %1319 = vrot.lane.b32.xlu0 %v998, 124
          %v1320 = vpop.permute.xlu0 %1319
          %1321 = vrot.lane.b32.xlu0 %v1000, 124
          %v1322 = vpop.permute.xlu0 %1321
          %1323 = vrot.lane.b32.xlu0 %v1002, 124
          %v1324 = vpop.permute.xlu0 %1323
          %1341 = vrot.lane.b32.xlu0 %v1110, 123
          %v1342 = vpop.permute.xlu0 %1341
          %1343 = vrot.lane.b32.xlu0 %v1112, 123
          %v1344 = vpop.permute.xlu0 %1343
          %1345 = vrot.lane.b32.xlu0 %v1114, 123
          %v1346 = vpop.permute.xlu0 %1345
          %1347 = vrot.lane.b32.xlu0 %v1116, 123
          %v1348 = vpop.permute.xlu0 %1347
          %1349 = vrot.lane.b32.xlu0 %v1118, 123
          %v1350 = vpop.permute.xlu0 %1349
          %1351 = vrot.lane.b32.xlu0 %v1120, 123
          %v1352 = vpop.permute.xlu0 %1351
          %1353 = vrot.lane.b32.xlu0 %v1122, 123
          %v1354 = vpop.permute.xlu0 %1353
          %1355 = vrot.lane.b32.xlu0 %v1124, 123
          %v1356 = vpop.permute.xlu0 %1355
          %1373 = vrot.lane.b32.xlu0 %v1253, 60
          %v1374 = vpop.permute.xlu0 %1373
          %1375 = vrot.lane.b32.xlu0 %v1254, 60
          %v1376 = vpop.permute.xlu0 %1375
          %1377 = vrot.lane.b32.xlu0 %v1255, 60
          %v1378 = vpop.permute.xlu0 %1377
          %1379 = vrot.lane.b32.xlu0 %v1256, 60
          %v1380 = vpop.permute.xlu0 %1379
          %1381 = vrot.lane.b32.xlu0 %v1257, 60
          %v1382 = vpop.permute.xlu0 %1381
          %1383 = vrot.lane.b32.xlu0 %v1258, 60
          %v1384 = vpop.permute.xlu0 %1383
          %1385 = vrot.lane.b32.xlu0 %v1259, 60
          %v1386 = vpop.permute.xlu0 %1385
          %1387 = vrot.lane.b32.xlu0 %v1260, 60
          %v1388 = vpop.permute.xlu0 %1387
          %1405 = vrot.lane.b32.xlu0 %v1261, 62
          %v1406 = vpop.permute.xlu0 %1405
          %1407 = vrot.lane.b32.xlu0 %v1262, 62
          %v1408 = vpop.permute.xlu0 %1407
          %1409 = vrot.lane.b32.xlu0 %v1263, 62
          %v1410 = vpop.permute.xlu0 %1409
          %1411 = vrot.lane.b32.xlu0 %v1264, 62
          %v1412 = vpop.permute.xlu0 %1411
          %1413 = vrot.lane.b32.xlu0 %v1265, 62
          %v1414 = vpop.permute.xlu0 %1413
          %1415 = vrot.lane.b32.xlu0 %v1266, 62
          %v1416 = vpop.permute.xlu0 %1415
          %1417 = vrot.lane.b32.xlu0 %v1267, 62
          %v1418 = vpop.permute.xlu0 %1417
          %1419 = vrot.lane.b32.xlu0 %v1268, 62
          %v1420 = vpop.permute.xlu0 %1419
          %1429 = vrot.lane.b32.xlu0 %v988, 59
          %v1430 = vpop.permute.xlu0 %1429
          %1431 = vrot.lane.b32.xlu0 %v990, 59
          %v1432 = vpop.permute.xlu0 %1431
          %1433 = vrot.lane.b32.xlu0 %v992, 59
          %v1434 = vpop.permute.xlu0 %1433
          %1435 = vrot.lane.b32.xlu0 %v994, 59
          %v1436 = vpop.permute.xlu0 %1435
          %1437 = vrot.lane.b32.xlu0 %v996, 59
          %v1438 = vpop.permute.xlu0 %1437
          %1439 = vrot.lane.b32.xlu0 %v998, 59
          %v1440 = vpop.permute.xlu0 %1439
          %1441 = vrot.lane.b32.xlu0 %v1000, 59
          %v1442 = vpop.permute.xlu0 %1441
          %1443 = vrot.lane.b32.xlu0 %v1002, 59
          %v1444 = vpop.permute.xlu0 %1443
          %1453 = vrot.lane.b32.xlu0 %v1110, 59
          %v1454 = vpop.permute.xlu0 %1453
          %1455 = vrot.lane.b32.xlu0 %v1112, 59
          %v1456 = vpop.permute.xlu0 %1455
          %1457 = vrot.lane.b32.xlu0 %v1114, 59
          %v1458 = vpop.permute.xlu0 %1457
          %1459 = vrot.lane.b32.xlu0 %v1116, 59
          %v1460 = vpop.permute.xlu0 %1459
          %1461 = vrot.lane.b32.xlu0 %v1118, 59
          %v1462 = vpop.permute.xlu0 %1461
          %1463 = vrot.lane.b32.xlu0 %v1120, 59
          %v1464 = vpop.permute.xlu0 %1463
          %1465 = vrot.lane.b32.xlu0 %v1122, 59
          %v1466 = vpop.permute.xlu0 %1465
          %1467 = vrot.lane.b32.xlu0 %v1124, 59
          %v1468 = vpop.permute.xlu0 %1467
          %vm1477 = vcmask 15360
          %v1478 = vsel %vm1477, %v1197, %v1278
          %v1479 = vsel %vm1477, %v1198, %v1280
          %v1480 = vsel %vm1477, %v1199, %v1282
          %v1481 = vsel %vm1477, %v1200, %v1284
          %v1482 = vsel %vm1477, %v1201, %v1286
          %v1483 = vsel %vm1477, %v1202, %v1288
          %v1484 = vsel %vm1477, %v1203, %v1290
          %v1485 = vsel %vm1477, %v1204, %v1292
          %vm1486 = vcmask 31744
          %v1487 = vsel %vm1486, %v1478, %v1310
          %v1488 = vsel %vm1486, %v1479, %v1312
          %v1489 = vsel %vm1486, %v1480, %v1314
          %v1490 = vsel %vm1486, %v1481, %v1316
          %v1491 = vsel %vm1486, %v1482, %v1318
          %v1492 = vsel %vm1486, %v1483, %v1320
          %v1493 = vsel %vm1486, %v1484, %v1322
          %v1494 = vsel %vm1486, %v1485, %v1324
          %vm1495 = vcmask 39936
          %v1496 = vsel %vm1495, %v1487, %v1342
          %v1497 = vsel %vm1495, %v1488, %v1344
          %v1498 = vsel %vm1495, %v1489, %v1346
          %v1499 = vsel %vm1495, %v1490, %v1348
          %v1500 = vsel %vm1495, %v1491, %v1350
          %v1501 = vsel %vm1495, %v1492, %v1352
          %v1502 = vsel %vm1495, %v1493, %v1354
          %v1503 = vsel %vm1495, %v1494, %v1356
          %vm1504 = vcmask 203776
          %v1505 = vsel %vm1504, %v1496, 0.0
          %v1506 = vsel %vm1504, %v1497, 0.0
          %v1507 = vsel %vm1504, %v1498, 0.0
          %v1508 = vsel %vm1504, %v1499, 0.0
          %v1509 = vsel %vm1504, %v1500, 0.0
          %v1510 = vsel %vm1504, %v1501, 0.0
          %v1511 = vsel %vm1504, %v1502, 0.0
          %v1512 = vsel %vm1504, %v1503, 0.0
          %vm1513 = vcmask 523264
          %v1514 = vsel %vm1513, %v1505, %v1374
          %v1515 = vsel %vm1513, %v1506, %v1376
          %v1516 = vsel %vm1513, %v1507, %v1378
          %v1517 = vsel %vm1513, %v1508, %v1380
          %v1518 = vsel %vm1513, %v1509, %v1382
          %v1519 = vsel %vm1513, %v1510, %v1384
          %v1520 = vsel %vm1513, %v1511, %v1386
          %v1521 = vsel %vm1513, %v1512, %v1388
          %vm1522 = vcmask 539648
          %v1523 = vsel %vm1522, %v1514, %v1406
          %v1524 = vsel %vm1522, %v1515, %v1408
          %v1525 = vsel %vm1522, %v1516, %v1410
          %v1526 = vsel %vm1522, %v1517, %v1412
          %v1527 = vsel %vm1522, %v1518, %v1414
          %v1528 = vsel %vm1522, %v1519, %v1416
          %v1529 = vsel %vm1522, %v1520, %v1418
          %v1530 = vsel %vm1522, %v1521, %v1420
          %vm1531 = vcmask 556032
          %v1532 = vsel %vm1531, %v1523, %v1430
          %v1533 = vsel %vm1531, %v1524, %v1432
          %v1534 = vsel %vm1531, %v1525, %v1434
          %v1535 = vsel %vm1531, %v1526, %v1436
          %v1536 = vsel %vm1531, %v1527, %v1438
          %v1537 = vsel %vm1531, %v1528, %v1440
          %v1538 = vsel %vm1531, %v1529, %v1442
          %v1539 = vsel %vm1531, %v1530, %v1444
          %vm1540 = vcmask 564224
          %v1541 = vsel %vm1540, %v1532, %v1454
          %v1542 = vsel %vm1540, %v1533, %v1456
          %v1543 = vsel %vm1540, %v1534, %v1458
          %v1544 = vsel %vm1540, %v1535, %v1460
          %v1545 = vsel %vm1540, %v1536, %v1462
          %v1546 = vsel %vm1540, %v1537, %v1464
          %v1547 = vsel %vm1540, %v1538, %v1466
          %v1548 = vsel %vm1540, %v1539, %v1468
          %vm1549 = vcmask 728064
          %v1550 = vsel %vm1549, %v1541, 0.0
          %v1551 = vsel %vm1549, %v1542, 0.0
          %v1552 = vsel %vm1549, %v1543, 0.0
          %v1553 = vsel %vm1549, %v1544, 0.0
          %v1554 = vsel %vm1549, %v1545, 0.0
          %v1555 = vsel %vm1549, %v1546, 0.0
          %v1556 = vsel %vm1549, %v1547, 0.0
          %v1557 = vsel %vm1549, %v1548, 0.0
          %1558 = vst [vmem:[%s346] sm:$0xff] %v1550
          %1559 = vst [vmem:[%s346 + $0x8] sm:$0xff] %v1551
          %1560 = vst [vmem:[%s346 + $0x10] sm:$0xff] %v1552
          %1561 = vst [vmem:[%s346 + $0x18] sm:$0xff] %v1553
          %1562 = vst [vmem:[%s346 + $0x20] sm:$0xff] %v1554
          %1563 = vst [vmem:[%s346 + $0x28] sm:$0xff] %v1555
          %1564 = vst [vmem:[%s346 + $0x30] sm:$0xff] %v1556
          %1565 = vst [vmem:[%s346 + $0x38] sm:$0xff] %v1557
        $region74: #{yolov1_forward.1} parent=61 // pred_fallthru
          _
        %s1566 = smul.u32 8, %s20
        %p1567 = scmp.lt.s32.totalorder %s1566, 15
        %s1568 = scalar_select %p1567, %s1566, 15
        %s1569 = smul.addr %s1568, 8
        %s1570 = scalar_lea.vmem %s5, %s1569
        // Predicated region
        $region75: #{yolov1_forward.1} parent=61 // pred_check
          %p1571 = pneg %p168
        $region76: #{yolov1_forward.1} parent=61 // pred_check_branch
          %1573 = sbr.rel (%p1571) target = $region78
        $region77: #{yolov1_forward.1} parent=61 // pred_region
          %s1574 = smul.u32 8, %s20
        $region78: #{yolov1_forward.1} parent=61 // pred_fallthru
          _
      $region62: #{yolov1_forward.1} parent=5 // pred_fallthru
        _
      %p1575 = scmp.le.s32.totalorder 2, %s11
      // Predicated region
      $region79: #{yolov1_forward.1} parent=5 // pred_check
        %p1576 = pneg %p1575
      $region80: #{yolov1_forward.1} parent=5 // pred_check_branch
        %1578 = sbr.rel (%p1576) target = $region82
      $region81: #{yolov1_forward.1} parent=5 // pred_region
        %s1579 = ssub.s32 %s11, 2
        // Predicated region
        $region83: #{yolov1_forward.1} parent=81 // pred_check
          %p1580 = pneg %p174
        $region84: #{yolov1_forward.1} parent=81 // pred_check_branch
          %1582 = sbr.rel (%p1580) target = $region86
        $region85: #{yolov1_forward.1} parent=81 // pred_region
          %s1583 = smul.u32 8, %s22
          %p1584 = scmp.lt.s32.totalorder %s1583, 15
          %s1585 = scalar_select %p1584, %s1583, 15
          %s1586 = smul.addr %s1585, 8
          %s1587 = scalar_lea.vmem %s5, %s1586
        $region86: #{yolov1_forward.1} parent=81 // pred_fallthru
          _
      $region82: #{yolov1_forward.1} parent=5 // pred_fallthru
        _
    $region6: #{yolov1_forward.1} parent=1 // loop_footer
      %s15 = sadd.s32 1, %s11
    $region7: #{yolov1_forward.1} parent=1 // loop_footer_branch
      %10 = sbr.rel target = $region3
    $region8: #{yolov1_forward.1} parent=1 // loop_exit
      _

</llo_original>
